<compile_context>
chip_gen: v5e
topology: v5e:2x2
jax: 0.10.0
libtpu: 0.0.40
codegen_flags: <defaults>
</compile_context>

<pallas_src>
import functools

import jax
import jax.numpy as jnp
from jax.experimental import pallas as pl
from jax.experimental.pallas import tpu as pltpu


def _round_up(x, m):
    return ((x + m - 1) // m) * m


# ----------------------------------------------------------------------------
# Kernel 1: per-edge messages  msg[e] = (x[src_e] @ W[rel(e)]) * scale[e]
# ----------------------------------------------------------------------------
def _msg_kernel(tile_rel_ref,          # scalar prefetch (used by W index_map)
                xsrc_ref,              # (1, TE, Dp) bf16 gathered src features
                w_ref,                 # (1, Dp, Dp) bf16 relation weight
                scale_ref,             # (1, TE, 1)  f32 per-edge scale
                out_ref):              # (1, TE, Dp) bf16 messages
    del tile_rel_ref
    msg = jnp.dot(xsrc_ref[0], w_ref[0], preferred_element_type=jnp.float32)
    msg = msg * scale_ref[0]           # edge_norm applied in f32
    out_ref[0] = msg.astype(out_ref.dtype)


def rgcn_messages_pallas(tile_rel, x_src, w_rel, edge_scale, *, te):
    """x_src: (B, E_pad, Dp) bf16; w_rel: (R, Dp, Dp) bf16; edge_scale: (B, E_pad, 1)."""
    Bp, E_pad, Dp = x_src.shape
    num_e_tiles = E_pad // te
    grid_spec = pltpu.PrefetchScalarGridSpec(
        num_scalar_prefetch=1,
        grid=(Bp, num_e_tiles),
        in_specs=[
            pl.BlockSpec((1, te, Dp), lambda b, e, tr: (b, e, 0)),      # x_src
            pl.BlockSpec((1, Dp, Dp), lambda b, e, tr: (tr[e], 0, 0)),  # W[rel]
            pl.BlockSpec((1, te, 1), lambda b, e, tr: (b, e, 0)),       # scale
        ],
        out_specs=pl.BlockSpec((1, te, Dp), lambda b, e, tr: (b, e, 0)),
    )
    return pl.pallas_call(
        _msg_kernel,
        out_shape=jax.ShapeDtypeStruct((Bp, E_pad, Dp), jnp.bfloat16),
        grid_spec=grid_spec,
        compiler_params=pltpu.CompilerParams(
            dimension_semantics=("parallel", "parallel"),
            vmem_limit_bytes=32 * 1024 * 1024,
        ),
    )(tile_rel, x_src, w_rel, edge_scale)


# ----------------------------------------------------------------------------
# Kernel 2: scatter-mean + root + bias (+ReLU), batched over real/imag
# ----------------------------------------------------------------------------
def _scatter_kernel(tile_valid_ref,    # scalar prefetch: 1 if E tile has edges
                    x_ref,             # (1, TN, Dp) bf16 node features
                    msg_ref,           # (1, TE, Dp) bf16 precomputed messages
                    scat_ref,          # (TN, TE)    int8 binary scatter (shared)
                    invdeg_ref,        # (TN, 1)     f32 1/deg (shared)
                    root_ref,          # (Dp, Dp)    bf16 root weight
                    bias_ref,          # (1, Dp)     f32 bias
                    out_ref,           # (1, TN, Dp) out_dtype output
                    acc_ref,           # (TN, Dp)    f32 accumulator
                    *, apply_relu):
    e = pl.program_id(2)

    @pl.when(e == 0)
    def _():
        acc_ref[...] = jnp.zeros_like(acc_ref)

    # skip fully-padded E tiles (pure-zero scatter columns)
    @pl.when(tile_valid_ref[e] != 0)
    def _():
        acc_ref[...] += jnp.dot(scat_ref[...].astype(jnp.bfloat16), msg_ref[0],
                                preferred_element_type=jnp.float32)

    @pl.when(e == pl.num_programs(2) - 1)
    def _():
        out = acc_ref[...] * invdeg_ref[...]                  # mean, in f32
        out = out + jnp.dot(x_ref[0], root_ref[...],
                            preferred_element_type=jnp.float32)
        out = out + bias_ref[...]
        if apply_relu:
            out = jnp.maximum(out, 0.0)
        out_ref[0] = out.astype(out_ref.dtype)


def rgcn_aggregate_pallas(tile_valid, x, msg, scat, inv_deg, root, bias,
                          *, apply_relu, out_dtype, tn, te):
    Bp, N_pad, Dp = x.shape
    E_pad = msg.shape[1]
    kernel = functools.partial(_scatter_kernel, apply_relu=apply_relu)
    grid_spec = pltpu.PrefetchScalarGridSpec(
        num_scalar_prefetch=1,
        grid=(Bp, N_pad // tn, E_pad // te),
        in_specs=[
            pl.BlockSpec((1, tn, Dp), lambda b, i, e, tv: (b, i, 0)),   # x
            pl.BlockSpec((1, te, Dp), lambda b, i, e, tv: (b, e, 0)),   # msg
            pl.BlockSpec((tn, te), lambda b, i, e, tv: (i, e)),         # scat
            pl.BlockSpec((tn, 1), lambda b, i, e, tv: (i, 0)),          # 1/deg
            pl.BlockSpec((Dp, Dp), lambda b, i, e, tv: (0, 0)),         # root
            pl.BlockSpec((1, Dp), lambda b, i, e, tv: (0, 0)),          # bias
        ],
        out_specs=pl.BlockSpec((1, tn, Dp), lambda b, i, e, tv: (b, i, 0)),
        scratch_shapes=[pltpu.VMEM((tn, Dp), jnp.float32)],
    )
    return pl.pallas_call(
        kernel,
        out_shape=jax.ShapeDtypeStruct((Bp, N_pad, Dp), out_dtype),
        grid_spec=grid_spec,
        compiler_params=pltpu.CompilerParams(
            dimension_semantics=("parallel", "parallel", "arbitrary"),
            vmem_limit_bytes=32 * 1024 * 1024,
        ),
    )(tile_valid, x, msg, scat, inv_deg, root, bias)


# ----------------------------------------------------------------------------
# Complex.forward
# ----------------------------------------------------------------------------
def complex_forward(params, entity, edge_index, edge_type, edge_norm):
    ent = entity.squeeze()
    x_real = params["emb_e_real"][ent]                 # embedding lookup (glue)
    x_img = params["emb_e_img"][ent]
    N, D = x_real.shape
    src, dst = edge_index[0], edge_index[1]
    E = src.shape[0]
    R = params["conv1"]["att"].shape[0]

    # ---- tile sizes ----------------------------------------------------------
    Dp = _round_up(D, 128)
    TN = min(512, _round_up(N, 32))          # 32-multiple -> safe int8 layouts
    N_pad = _round_up(N, TN)
    TE = 256                                 # fills the 256-deep MXU on v6e/v7x
    num_e_tiles = -(-E // TE) + R            # worst-case relation padding
    E_pad = num_e_tiles * TE

    # ---- sort edges by relation; pad each relation to TE-aligned slabs ------
    order = jnp.argsort(edge_type)
    src_s, dst_s = src[order], dst[order]
    type_s, norm_s = edge_type[order], edge_norm[order]

    counts = jax.ops.segment_sum(jnp.ones((E,), jnp.int32), type_s,
                                 num_segments=R)                      # (R,)
    start = jnp.cumsum(counts) - counts
    tiles = (counts + TE - 1) // TE
    cum_tiles = jnp.cumsum(tiles)
    pstart = (cum_tiles - tiles) * TE
    pos = pstart[type_s] + (jnp.arange(E, dtype=jnp.int32) - start[type_s])
    tile_idx = jnp.arange(num_e_tiles, dtype=jnp.int32)
    tile_rel = jnp.clip(jnp.searchsorted(cum_tiles, tile_idx, side="right"),
                        0, R - 1).astype(jnp.int32)
    tile_valid = (tile_idx < cum_tiles[R - 1]).astype(jnp.int32)
    src_pad = jnp.zeros((E_pad,), jnp.int32).at[pos].set(src_s)

    # ---- single binary scatter matrix (shared by real/imag), int8 -----------
    scat = jnp.zeros((N_pad, E_pad), jnp.int8).at[dst_s, pos].set(1)

    # ---- per-node 1/deg (mean aggregation), f32, shared ----------------------
    deg = jax.ops.segment_sum(jnp.ones((E,), jnp.float32), dst, num_segments=N)
    inv = jnp.where(deg > 0, 1.0 / jnp.maximum(deg, 1.0), 0.0)
    inv_deg = jnp.zeros((N_pad, 1), jnp.float32).at[:N, 0].set(inv)

    # ---- per-edge scale: real path -> 1, imag path -> edge_norm --------------
    edge_scale = jnp.ones((2, E_pad, 1), jnp.float32).at[1, pos, 0].set(norm_s)

    # ---- pad node features / parameters to lane-dense shapes ----------------
    def pad_x(x):
        return jnp.zeros((N_pad, Dp), jnp.bfloat16).at[:N, :D].set(
            x.astype(jnp.bfloat16))

    x0 = jnp.stack([pad_x(x_real), pad_x(x_img)])             # (2, N_pad, Dp)

    def layer_params(p):
        B_, D_, _ = p["basis"].shape
        w_rel = (p["att"] @ p["basis"].reshape(B_, -1)).reshape(R, D, D)
        w_pad = jnp.zeros((R, Dp, Dp), jnp.bfloat16).at[:, :D, :D].set(
            w_rel.astype(jnp.bfloat16))
        root_pad = jnp.zeros((Dp, Dp), jnp.bfloat16).at[:D, :D].set(
            p["root"].astype(jnp.bfloat16))
        bias_pad = jnp.zeros((1, Dp), jnp.float32).at[0, :D].set(
            p["bias"].astype(jnp.float32))
        return w_pad, root_pad, bias_pad

    w1, r1, b1 = layer_params(params["conv1"])
    w2, r2, b2 = layer_params(params["conv2"])

    # ---- layer 1 (bf16 output fed straight into layer 2) --------------------
    x0_src = x0[:, src_pad, :]                                 # gather (glue)
    msg1 = rgcn_messages_pallas(tile_rel, x0_src, w1, edge_scale, te=TE)
    h = rgcn_aggregate_pallas(tile_valid, x0, msg1, scat, inv_deg, r1, b1,
                              apply_relu=True, out_dtype=jnp.bfloat16,
                              tn=TN, te=TE)
    # TODO(synk): F.dropout(p=dropout_ratio) is stochastic; treated as identity.

    # ---- layer 2 -------------------------------------------------------------
    h_src = h[:, src_pad, :]
    msg2 = rgcn_messages_pallas(tile_rel, h_src, w2, edge_scale, te=TE)
    out = rgcn_aggregate_pallas(tile_valid, h, msg2, scat, inv_deg, r2, b2,
                                apply_relu=False, out_dtype=jnp.float32,
                                tn=TN, te=TE)

    return out[0, :N, :D], out[1, :N, :D]


# ----------------------------------------------------------------------------
# Pure-JAX reference (sanity check of the kernel math)
# ----------------------------------------------------------------------------
def _rgcn_ref(x, edge_index, edge_type, edge_norm, w_rel, root, bias):
    src, dst = edge_index[0], edge_index[1]
    msg = jnp.einsum("ed,edo->eo", x[src], w_rel[edge_type])
    if edge_norm is not None:
        msg = msg * edge_norm[:, None]
    N = x.shape[0]
    summed = jax.ops.segment_sum(msg, dst, num_segments=N)
    cnt = jax.ops.segment_sum(jnp.ones(dst.shape, jnp.float32), dst,
                              num_segments=N)
    aggr = summed / jnp.maximum(cnt, 1.0)[:, None]
    return aggr + x @ root + bias


def complex_forward_ref(params, entity, edge_index, edge_type, edge_norm):
    ent = entity.squeeze()
    x_real = params["emb_e_real"][ent]
    x_img = params["emb_e_img"][ent]
    R = params["conv1"]["att"].shape[0]

    def layer(p, x, norm, relu):
        B, D, _ = p["basis"].shape
        w_rel = (p["att"] @ p["basis"].reshape(B, -1)).reshape(R, D, D)
        out = _rgcn_ref(x, edge_index, edge_type, norm, w_rel, p["root"],
                        p["bias"])
        return jnp.maximum(out, 0.0) if relu else out

    h = layer(params["conv1"], x_real, None, True)
    out_real = layer(params["conv2"], h, None, False)
    g = layer(params["conv1"], x_img, edge_norm, True)
    out_img = layer(params["conv2"], g, edge_norm, False)
    return out_real, out_img


# ----------------------------------------------------------------------------
# Deterministic parameter init (shapes from Complex.__init__ / RGCNConv.__init__)
# ----------------------------------------------------------------------------
def init_params(key, num_entities, embedding_dim, num_relations, num_bases):
    R = num_relations * 2                       # RGCN uses num_relations * 2
    D = embedding_dim
    B = num_bases
    keys = jax.random.split(key, 12)

    def xavier_normal(k, shape):
        std = (2.0 / (shape[0] + shape[1])) ** 0.5
        return std * jax.random.normal(k, shape, jnp.float32)

    def uniform(k, shape, size):
        bound = 1.0 / (size ** 0.5)
        return jax.random.uniform(k, shape, jnp.float32, -bound, bound)

    emb_real = xavier_normal(keys[0], (num_entities, D)).at[0].set(0.0)
    emb_img = xavier_normal(keys[1], (num_entities, D)).at[0].set(0.0)

    def conv_params(k0, k1, k2, k3):
        size = B * D
        return {
            "basis": uniform(k0, (B, D, D), size),
            "att": uniform(k1, (R, B), size),
            "root": uniform(k2, (D, D), size),
            "bias": uniform(k3, (D,), size),
        }

    return {
        "emb_e_real": emb_real,
        "emb_e_img": emb_img,
        "conv1": conv_params(*keys[2:6]),
        "conv2": conv_params(*keys[6:10]),
    }


# ----------------------------------------------------------------------------
if __name__ == "__main__":
    NUM_ENTITIES = 40
    EMBED_DIM = 32
    NUM_RELATIONS = 4          # Complex arg; RGCN sees 2*4 = 8 relation types
    NUM_BASES = 4
    NUM_NODES = 16
    NUM_EDGES = 64

    key = jax.random.PRNGKey(0)
    kp, ke, ks, kd, kt, kn = jax.random.split(key, 6)

    params = init_params(kp, NUM_ENTITIES, EMBED_DIM, NUM_RELATIONS, NUM_BASES)

    entity = jax.random.randint(ke, (NUM_NODES, 1), 0, NUM_ENTITIES, jnp.int32)
    src = jax.random.randint(ks, (NUM_EDGES,), 0, NUM_NODES, jnp.int32)
    dst = jax.random.randint(kd, (NUM_EDGES,), 0, NUM_NODES, jnp.int32)
    edge_index = jnp.stack([src, dst], axis=0)                     # (2, E)
    edge_type = jax.random.randint(kt, (NUM_EDGES,), 0,
                                   2 * NUM_RELATIONS, jnp.int32)   # (E,)
    edge_norm = jax.random.uniform(kn, (NUM_EDGES,), jnp.float32,
                                   0.1, 1.0)                       # (E,)

    fwd = jax.jit(complex_forward)
    out_real, out_img = fwd(params, entity, edge_index, edge_type, edge_norm)
    jax.block_until_ready((out_real, out_img))

    ref_real, ref_img = complex_forward_ref(params, entity, edge_index,
                                            edge_type, edge_norm)
    assert out_real.shape == (NUM_NODES, EMBED_DIM)
    assert out_img.shape == (NUM_NODES, EMBED_DIM)
    # bf16 MXU operands with f32 accumulation / f32 deg+norm scaling
    assert jnp.allclose(out_real, ref_real, rtol=2e-2, atol=2e-2)
    assert jnp.allclose(out_img, ref_img, rtol=2e-2, atol=2e-2)

    print("KERNEL_OK")
</pallas_src>

<mosaic_0001>
module attributes {stable_mosaic.version = 11 : i64} {
  func.func @_msg_kernel(%arg0: i32, %arg1: i32, %arg2: memref<9xi32, #tpu.memory_space<smem>>, %arg3: memref<1x256x128xbf16, #tpu.memory_space<vmem>>, %arg4: memref<1x128x128xbf16, #tpu.memory_space<vmem>>, %arg5: memref<1x256x1xf32, #tpu.memory_space<vmem>>, %arg6: memref<1x256x128xbf16, #tpu.memory_space<vmem>>) attributes {dimension_semantics = [#tpu.dimension_semantics<parallel>, #tpu.dimension_semantics<parallel>], iteration_bounds = array<i64: 2, 9>, scalar_prefetch = 1 : i64, scratch_operands = 0 : i64, tpu.core_type = #tpu.core_type<tc>, window_params = [{transform_indices = @transform_0, window_bounds = array<i64: 1, 256, 128>}, {transform_indices = @transform_1, window_bounds = array<i64: 1, 128, 128>}, {transform_indices = @transform_2, window_bounds = array<i64: 1, 256, 1>}, {transform_indices = @transform_3, window_bounds = array<i64: 1, 256, 128>}]} {
    %c0 = arith.constant 0 : index
    %c0_0 = arith.constant 0 : index
    %c0_1 = arith.constant 0 : index
    %0 = vector.load %arg3[%c0, %c0_0, %c0_1] : memref<1x256x128xbf16, #tpu.memory_space<vmem>>, vector<1x256x128xbf16>
    %1 = vector.shape_cast %0 : vector<1x256x128xbf16> to vector<256x128xbf16>
    %c0_2 = arith.constant 0 : index
    %c0_3 = arith.constant 0 : index
    %c0_4 = arith.constant 0 : index
    %2 = vector.load %arg4[%c0_2, %c0_3, %c0_4] : memref<1x128x128xbf16, #tpu.memory_space<vmem>>, vector<1x128x128xbf16>
    %3 = vector.shape_cast %2 : vector<1x128x128xbf16> to vector<128x128xbf16>
    %cst = arith.constant dense<0.000000e+00> : vector<256x128xf32>
    %4 = tpu.matmul %1, %3, %cst {dimension_numbers = #tpu.dot_dimension_numbers<[1], [0], [0], [1], [0, 0, 1, 1], [], []>} : vector<256x128xbf16>, vector<128x128xbf16>, vector<256x128xf32> -> vector<256x128xf32>
    %c0_5 = arith.constant 0 : index
    %c0_6 = arith.constant 0 : index
    %c0_7 = arith.constant 0 : index
    %5 = vector.load %arg5[%c0_5, %c0_6, %c0_7] : memref<1x256x1xf32, #tpu.memory_space<vmem>>, vector<1x256x1xf32>
    %6 = vector.shape_cast %5 : vector<1x256x1xf32> to vector<256x1xf32>
    %7 = vector.broadcast %6 : vector<256x1xf32> to vector<256x128xf32>
    %8 = arith.mulf %4, %7 : vector<256x128xf32>
    %9 = arith.truncf %8 : vector<256x128xf32> to vector<256x128xbf16>
    %c0_8 = arith.constant 0 : index
    %c0_9 = arith.constant 0 : index
    %c0_10 = arith.constant 0 : index
    %10 = vector.load %arg6[%c0_8, %c0_9, %c0_10] : memref<1x256x128xbf16, #tpu.memory_space<vmem>>, vector<1x256x128xbf16>
    %11 = vector.shape_cast %10 : vector<1x256x128xbf16> to vector<256x128xbf16>
    %12 = vector.shape_cast %9 : vector<256x128xbf16> to vector<1x256x128xbf16>
    tpu.vector_store %arg6[%c0_8, %c0_9, %c0_10], %12 {strides = array<i32>} : memref<1x256x128xbf16, #tpu.memory_space<vmem>>, vector<1x256x128xbf16>,
    return
  }
  func.func @transform_0(%arg0: i32, %arg1: i32, %arg2: memref<9xi32, #tpu.memory_space<smem>>) -> (i32, i32, i32) {
    %c0_i32 = arith.constant 0 : i32
    %c0_i32_0 = arith.constant 0 : i32
    return %arg0, %arg1, %c0_i32 : i32, i32, i32
  }
  func.func @transform_1(%arg0: i32, %arg1: i32, %arg2: memref<9xi32, #tpu.memory_space<smem>>) -> (i32, i32, i32) {
    %0 = arith.index_cast %arg1 : i32 to index
    %1 = memref.load %arg2[%0] : memref<9xi32, #tpu.memory_space<smem>>
    %c0_i32 = arith.constant 0 : i32
    %c0_i32_0 = arith.constant 0 : i32
    %c0_i32_1 = arith.constant 0 : i32
    return %1, %c0_i32, %c0_i32_0 : i32, i32, i32
  }
  func.func @transform_2(%arg0: i32, %arg1: i32, %arg2: memref<9xi32, #tpu.memory_space<smem>>) -> (i32, i32, i32) {
    %c0_i32 = arith.constant 0 : i32
    %c0_i32_0 = arith.constant 0 : i32
    return %arg0, %arg1, %c0_i32 : i32, i32, i32
  }
  func.func @transform_3(%arg0: i32, %arg1: i32, %arg2: memref<9xi32, #tpu.memory_space<smem>>) -> (i32, i32, i32) {
    %c0_i32 = arith.constant 0 : i32
    %c0_i32_0 = arith.constant 0 : i32
    return %arg0, %arg1, %c0_i32 : i32, i32, i32
  }
}

module attributes {stable_mosaic.version = 11 : i64} {
  func.func @_scatter_kernel(%arg0: i32, %arg1: i32, %arg2: i32, %arg3: memref<9xi32, #tpu.memory_space<smem>>, %arg4: memref<1x32x128xbf16, #tpu.memory_space<vmem>>, %arg5: memref<1x256x128xbf16, #tpu.memory_space<vmem>>, %arg6: memref<32x256xi8, #tpu.memory_space<vmem>>, %arg7: memref<32x1xf32, #tpu.memory_space<vmem>>, %arg8: memref<128x128xbf16, #tpu.memory_space<vmem>>, %arg9: memref<1x128xf32, #tpu.memory_space<vmem>>, %arg10: memref<1x32x128xbf16, #tpu.memory_space<vmem>>, %arg11: memref<32x128xf32, #tpu.memory_space<vmem>>) attributes {dimension_semantics = [#tpu.dimension_semantics<parallel>, #tpu.dimension_semantics<parallel>, #tpu.dimension_semantics<arbitrary>], iteration_bounds = array<i64: 2, 1, 9>, scalar_prefetch = 1 : i64, scratch_operands = 1 : i64, tpu.core_type = #tpu.core_type<tc>, window_params = [{transform_indices = @transform_0, window_bounds = array<i64: 1, 32, 128>}, {transform_indices = @transform_1, window_bounds = array<i64: 1, 256, 128>}, {transform_indices = @transform_2, window_bounds = array<i64: 32, 256>}, {transform_indices = @transform_3, window_bounds = array<i64: 32, 1>}, {pipeline_mode = #tpu.pipeline_mode<synchronous>, transform_indices = @transform_4, window_bounds = array<i64: 128, 128>}, {pipeline_mode = #tpu.pipeline_mode<synchronous>, transform_indices = @transform_5, window_bounds = array<i64: 1, 128>}, {transform_indices = @transform_6, window_bounds = array<i64: 1, 32, 128>}]} {
    %c0_i32 = arith.constant 0 : i32
    %0 = arith.cmpi eq, %arg2, %c0_i32 : i32
    %1 = arith.extui %0 : i1 to i32
    %c0_i32_0 = arith.constant 0 : i32
    %2 = arith.cmpi ne, %1, %c0_i32_0 : i32
    scf.if %2 {
      %cst = arith.constant 0.000000e+00 : f32
      %11 = vector.broadcast %cst : f32 to vector<32x128xf32>
      %c0 = arith.constant 0 : index
      %c0_4 = arith.constant 0 : index
      %12 = vector.load %arg11[%c0, %c0_4] : memref<32x128xf32, #tpu.memory_space<vmem>>, vector<32x128xf32>
      tpu.vector_store %arg11[%c0, %c0_4], %11 {strides = array<i32>} : memref<32x128xf32, #tpu.memory_space<vmem>>, vector<32x128xf32>,
    } else {
    }
    %3 = arith.index_cast %arg2 : i32 to index
    %4 = memref.load %arg3[%3] : memref<9xi32, #tpu.memory_space<smem>>
    %c0_i32_1 = arith.constant 0 : i32
    %5 = arith.cmpi ne, %4, %c0_i32_1 : i32
    %6 = arith.extui %5 : i1 to i32
    %c0_i32_2 = arith.constant 0 : i32
    %7 = arith.cmpi ne, %6, %c0_i32_2 : i32
    scf.if %7 {
      %c0 = arith.constant 0 : index
      %c0_4 = arith.constant 0 : index
      %11 = vector.load %arg11[%c0, %c0_4] : memref<32x128xf32, #tpu.memory_space<vmem>>, vector<32x128xf32>
      %c0_5 = arith.constant 0 : index
      %c0_6 = arith.constant 0 : index
      %12 = vector.load %arg6[%c0_5, %c0_6] : memref<32x256xi8, #tpu.memory_space<vmem>>, vector<32x256xi8>
      %13 = arith.sitofp %12 : vector<32x256xi8> to vector<32x256xbf16>
      %c0_7 = arith.constant 0 : index
      %c0_8 = arith.constant 0 : index
      %c0_9 = arith.constant 0 : index
      %14 = vector.load %arg5[%c0_7, %c0_8, %c0_9] : memref<1x256x128xbf16, #tpu.memory_space<vmem>>, vector<1x256x128xbf16>
      %15 = vector.shape_cast %14 : vector<1x256x128xbf16> to vector<256x128xbf16>
      %cst = arith.constant dense<0.000000e+00> : vector<32x128xf32>
      %16 = tpu.matmul %13, %15, %cst {dimension_numbers = #tpu.dot_dimension_numbers<[1], [0], [0], [1], [0, 0, 1, 1], [], []>} : vector<32x256xbf16>, vector<256x128xbf16>, vector<32x128xf32> -> vector<32x128xf32>
      %17 = arith.addf %11, %16 : vector<32x128xf32>
      %c0_10 = arith.constant 0 : index
      %c0_11 = arith.constant 0 : index
      %18 = vector.load %arg11[%c0_10, %c0_11] : memref<32x128xf32, #tpu.memory_space<vmem>>, vector<32x128xf32>
      tpu.vector_store %arg11[%c0_10, %c0_11], %17 {strides = array<i32>} : memref<32x128xf32, #tpu.memory_space<vmem>>, vector<32x128xf32>,
    } else {
    }
    %c8_i32 = arith.constant 8 : i32
    %8 = arith.cmpi eq, %arg2, %c8_i32 : i32
    %9 = arith.extui %8 : i1 to i32
    %c0_i32_3 = arith.constant 0 : i32
    %10 = arith.cmpi ne, %9, %c0_i32_3 : i32
    scf.if %10 {
      %c0 = arith.constant 0 : index
      %c0_4 = arith.constant 0 : index
      %11 = vector.load %arg11[%c0, %c0_4] : memref<32x128xf32, #tpu.memory_space<vmem>>, vector<32x128xf32>
      %c0_5 = arith.constant 0 : index
      %c0_6 = arith.constant 0 : index
      %12 = vector.load %arg7[%c0_5, %c0_6] : memref<32x1xf32, #tpu.memory_space<vmem>>, vector<32x1xf32>
      %13 = vector.broadcast %12 : vector<32x1xf32> to vector<32x128xf32>
      %14 = arith.mulf %11, %13 : vector<32x128xf32>
      %c0_7 = arith.constant 0 : index
      %c0_8 = arith.constant 0 : index
      %c0_9 = arith.constant 0 : index
      %15 = vector.load %arg4[%c0_7, %c0_8, %c0_9] : memref<1x32x128xbf16, #tpu.memory_space<vmem>>, vector<1x32x128xbf16>
      %16 = vector.shape_cast %15 : vector<1x32x128xbf16> to vector<32x128xbf16>
      %c0_10 = arith.constant 0 : index
      %c0_11 = arith.constant 0 : index
      %17 = vector.load %arg8[%c0_10, %c0_11] : memref<128x128xbf16, #tpu.memory_space<vmem>>, vector<128x128xbf16>
      %cst = arith.constant dense<0.000000e+00> : vector<32x128xf32>
      %18 = tpu.matmul %16, %17, %cst {dimension_numbers = #tpu.dot_dimension_numbers<[1], [0], [0], [1], [0, 0, 1, 1], [], []>} : vector<32x128xbf16>, vector<128x128xbf16>, vector<32x128xf32> -> vector<32x128xf32>
      %19 = arith.addf %14, %18 : vector<32x128xf32>
      %c0_12 = arith.constant 0 : index
      %c0_13 = arith.constant 0 : index
      %20 = vector.load %arg9[%c0_12, %c0_13] : memref<1x128xf32, #tpu.memory_space<vmem>>, vector<1x128xf32>
      %21 = vector.broadcast %20 : vector<1x128xf32> to vector<32x128xf32>
      %22 = arith.addf %19, %21 : vector<32x128xf32>
      %cst_14 = arith.constant 0.000000e+00 : f32
      %23 = vector.broadcast %cst_14 : f32 to vector<32x128xf32>
      %24 = arith.maximumf %22, %23 : vector<32x128xf32>
      %25 = arith.truncf %24 : vector<32x128xf32> to vector<32x128xbf16>
      %c0_15 = arith.constant 0 : index
      %c0_16 = arith.constant 0 : index
      %c0_17 = arith.constant 0 : index
      %26 = vector.load %arg10[%c0_15, %c0_16, %c0_17] : memref<1x32x128xbf16, #tpu.memory_space<vmem>>, vector<1x32x128xbf16>
      %27 = vector.shape_cast %26 : vector<1x32x128xbf16> to vector<32x128xbf16>
      %28 = vector.shape_cast %25 : vector<32x128xbf16> to vector<1x32x128xbf16>
      tpu.vector_store %arg10[%c0_15, %c0_16, %c0_17], %28 {strides = array<i32>} : memref<1x32x128xbf16, #tpu.memory_space<vmem>>, vector<1x32x128xbf16>,
    } else {
    }
    return
  }
  func.func @transform_0(%arg0: i32, %arg1: i32, %arg2: i32, %arg3: memref<9xi32, #tpu.memory_space<smem>>) -> (i32, i32, i32) {
    %c0_i32 = arith.constant 0 : i32
    %c0_i32_0 = arith.constant 0 : i32
    return %arg0, %arg1, %c0_i32 : i32, i32, i32
  }
  func.func @transform_1(%arg0: i32, %arg1: i32, %arg2: i32, %arg3: memref<9xi32, #tpu.memory_space<smem>>) -> (i32, i32, i32) {
    %c0_i32 = arith.constant 0 : i32
    %c0_i32_0 = arith.constant 0 : i32
    return %arg0, %arg2, %c0_i32 : i32, i32, i32
  }
  func.func @transform_2(%arg0: i32, %arg1: i32, %arg2: i32, %arg3: memref<9xi32, #tpu.memory_space<smem>>) -> (i32, i32) {
    %c0_i32 = arith.constant 0 : i32
    return %arg1, %arg2 : i32, i32
  }
  func.func @transform_3(%arg0: i32, %arg1: i32, %arg2: i32, %arg3: memref<9xi32, #tpu.memory_space<smem>>) -> (i32, i32) {
    %c0_i32 = arith.constant 0 : i32
    %c0_i32_0 = arith.constant 0 : i32
    return %arg1, %c0_i32 : i32, i32
  }
  func.func @transform_4(%arg0: i32, %arg1: i32, %arg2: i32, %arg3: memref<9xi32, #tpu.memory_space<smem>>) -> (i32, i32) {
    %c0_i32 = arith.constant 0 : i32
    %c0_i32_0 = arith.constant 0 : i32
    %c0_i32_1 = arith.constant 0 : i32
    return %c0_i32, %c0_i32_0 : i32, i32
  }
  func.func @transform_5(%arg0: i32, %arg1: i32, %arg2: i32, %arg3: memref<9xi32, #tpu.memory_space<smem>>) -> (i32, i32) {
    %c0_i32 = arith.constant 0 : i32
    %c0_i32_0 = arith.constant 0 : i32
    %c0_i32_1 = arith.constant 0 : i32
    return %c0_i32, %c0_i32_0 : i32, i32
  }
  func.func @transform_6(%arg0: i32, %arg1: i32, %arg2: i32, %arg3: memref<9xi32, #tpu.memory_space<smem>>) -> (i32, i32, i32) {
    %c0_i32 = arith.constant 0 : i32
    %c0_i32_0 = arith.constant 0 : i32
    return %arg0, %arg1, %c0_i32 : i32, i32, i32
  }
}

module attributes {stable_mosaic.version = 11 : i64} {
  func.func @_scatter_kernel(%arg0: i32, %arg1: i32, %arg2: i32, %arg3: memref<9xi32, #tpu.memory_space<smem>>, %arg4: memref<1x32x128xbf16, #tpu.memory_space<vmem>>, %arg5: memref<1x256x128xbf16, #tpu.memory_space<vmem>>, %arg6: memref<32x256xi8, #tpu.memory_space<vmem>>, %arg7: memref<32x1xf32, #tpu.memory_space<vmem>>, %arg8: memref<128x128xbf16, #tpu.memory_space<vmem>>, %arg9: memref<1x128xf32, #tpu.memory_space<vmem>>, %arg10: memref<1x32x128xf32, #tpu.memory_space<vmem>>, %arg11: memref<32x128xf32, #tpu.memory_space<vmem>>) attributes {dimension_semantics = [#tpu.dimension_semantics<parallel>, #tpu.dimension_semantics<parallel>, #tpu.dimension_semantics<arbitrary>], iteration_bounds = array<i64: 2, 1, 9>, scalar_prefetch = 1 : i64, scratch_operands = 1 : i64, tpu.core_type = #tpu.core_type<tc>, window_params = [{transform_indices = @transform_0, window_bounds = array<i64: 1, 32, 128>}, {transform_indices = @transform_1, window_bounds = array<i64: 1, 256, 128>}, {transform_indices = @transform_2, window_bounds = array<i64: 32, 256>}, {transform_indices = @transform_3, window_bounds = array<i64: 32, 1>}, {pipeline_mode = #tpu.pipeline_mode<synchronous>, transform_indices = @transform_4, window_bounds = array<i64: 128, 128>}, {pipeline_mode = #tpu.pipeline_mode<synchronous>, transform_indices = @transform_5, window_bounds = array<i64: 1, 128>}, {transform_indices = @transform_6, window_bounds = array<i64: 1, 32, 128>}]} {
    %c0_i32 = arith.constant 0 : i32
    %0 = arith.cmpi eq, %arg2, %c0_i32 : i32
    %1 = arith.extui %0 : i1 to i32
    %c0_i32_0 = arith.constant 0 : i32
    %2 = arith.cmpi ne, %1, %c0_i32_0 : i32
    scf.if %2 {
      %cst = arith.constant 0.000000e+00 : f32
      %11 = vector.broadcast %cst : f32 to vector<32x128xf32>
      %c0 = arith.constant 0 : index
      %c0_4 = arith.constant 0 : index
      %12 = vector.load %arg11[%c0, %c0_4] : memref<32x128xf32, #tpu.memory_space<vmem>>, vector<32x128xf32>
      tpu.vector_store %arg11[%c0, %c0_4], %11 {strides = array<i32>} : memref<32x128xf32, #tpu.memory_space<vmem>>, vector<32x128xf32>,
    } else {
    }
    %3 = arith.index_cast %arg2 : i32 to index
    %4 = memref.load %arg3[%3] : memref<9xi32, #tpu.memory_space<smem>>
    %c0_i32_1 = arith.constant 0 : i32
    %5 = arith.cmpi ne, %4, %c0_i32_1 : i32
    %6 = arith.extui %5 : i1 to i32
    %c0_i32_2 = arith.constant 0 : i32
    %7 = arith.cmpi ne, %6, %c0_i32_2 : i32
    scf.if %7 {
      %c0 = arith.constant 0 : index
      %c0_4 = arith.constant 0 : index
      %11 = vector.load %arg11[%c0, %c0_4] : memref<32x128xf32, #tpu.memory_space<vmem>>, vector<32x128xf32>
      %c0_5 = arith.constant 0 : index
      %c0_6 = arith.constant 0 : index
      %12 = vector.load %arg6[%c0_5, %c0_6] : memref<32x256xi8, #tpu.memory_space<vmem>>, vector<32x256xi8>
      %13 = arith.sitofp %12 : vector<32x256xi8> to vector<32x256xbf16>
      %c0_7 = arith.constant 0 : index
      %c0_8 = arith.constant 0 : index
      %c0_9 = arith.constant 0 : index
      %14 = vector.load %arg5[%c0_7, %c0_8, %c0_9] : memref<1x256x128xbf16, #tpu.memory_space<vmem>>, vector<1x256x128xbf16>
      %15 = vector.shape_cast %14 : vector<1x256x128xbf16> to vector<256x128xbf16>
      %cst = arith.constant dense<0.000000e+00> : vector<32x128xf32>
      %16 = tpu.matmul %13, %15, %cst {dimension_numbers = #tpu.dot_dimension_numbers<[1], [0], [0], [1], [0, 0, 1, 1], [], []>} : vector<32x256xbf16>, vector<256x128xbf16>, vector<32x128xf32> -> vector<32x128xf32>
      %17 = arith.addf %11, %16 : vector<32x128xf32>
      %c0_10 = arith.constant 0 : index
      %c0_11 = arith.constant 0 : index
      %18 = vector.load %arg11[%c0_10, %c0_11] : memref<32x128xf32, #tpu.memory_space<vmem>>, vector<32x128xf32>
      tpu.vector_store %arg11[%c0_10, %c0_11], %17 {strides = array<i32>} : memref<32x128xf32, #tpu.memory_space<vmem>>, vector<32x128xf32>,
    } else {
    }
    %c8_i32 = arith.constant 8 : i32
    %8 = arith.cmpi eq, %arg2, %c8_i32 : i32
    %9 = arith.extui %8 : i1 to i32
    %c0_i32_3 = arith.constant 0 : i32
    %10 = arith.cmpi ne, %9, %c0_i32_3 : i32
    scf.if %10 {
      %c0 = arith.constant 0 : index
      %c0_4 = arith.constant 0 : index
      %11 = vector.load %arg11[%c0, %c0_4] : memref<32x128xf32, #tpu.memory_space<vmem>>, vector<32x128xf32>
      %c0_5 = arith.constant 0 : index
      %c0_6 = arith.constant 0 : index
      %12 = vector.load %arg7[%c0_5, %c0_6] : memref<32x1xf32, #tpu.memory_space<vmem>>, vector<32x1xf32>
      %13 = vector.broadcast %12 : vector<32x1xf32> to vector<32x128xf32>
      %14 = arith.mulf %11, %13 : vector<32x128xf32>
      %c0_7 = arith.constant 0 : index
      %c0_8 = arith.constant 0 : index
      %c0_9 = arith.constant 0 : index
      %15 = vector.load %arg4[%c0_7, %c0_8, %c0_9] : memref<1x32x128xbf16, #tpu.memory_space<vmem>>, vector<1x32x128xbf16>
      %16 = vector.shape_cast %15 : vector<1x32x128xbf16> to vector<32x128xbf16>
      %c0_10 = arith.constant 0 : index
      %c0_11 = arith.constant 0 : index
      %17 = vector.load %arg8[%c0_10, %c0_11] : memref<128x128xbf16, #tpu.memory_space<vmem>>, vector<128x128xbf16>
      %cst = arith.constant dense<0.000000e+00> : vector<32x128xf32>
      %18 = tpu.matmul %16, %17, %cst {dimension_numbers = #tpu.dot_dimension_numbers<[1], [0], [0], [1], [0, 0, 1, 1], [], []>} : vector<32x128xbf16>, vector<128x128xbf16>, vector<32x128xf32> -> vector<32x128xf32>
      %19 = arith.addf %14, %18 : vector<32x128xf32>
      %c0_12 = arith.constant 0 : index
      %c0_13 = arith.constant 0 : index
      %20 = vector.load %arg9[%c0_12, %c0_13] : memref<1x128xf32, #tpu.memory_space<vmem>>, vector<1x128xf32>
      %21 = vector.broadcast %20 : vector<1x128xf32> to vector<32x128xf32>
      %22 = arith.addf %19, %21 : vector<32x128xf32>
      %c0_14 = arith.constant 0 : index
      %c0_15 = arith.constant 0 : index
      %c0_16 = arith.constant 0 : index
      %23 = vector.load %arg10[%c0_14, %c0_15, %c0_16] : memref<1x32x128xf32, #tpu.memory_space<vmem>>, vector<1x32x128xf32>
      %24 = vector.shape_cast %23 : vector<1x32x128xf32> to vector<32x128xf32>
      %25 = vector.shape_cast %22 : vector<32x128xf32> to vector<1x32x128xf32>
      tpu.vector_store %arg10[%c0_14, %c0_15, %c0_16], %25 {strides = array<i32>} : memref<1x32x128xf32, #tpu.memory_space<vmem>>, vector<1x32x128xf32>,
    } else {
    }
    return
  }
  func.func @transform_0(%arg0: i32, %arg1: i32, %arg2: i32, %arg3: memref<9xi32, #tpu.memory_space<smem>>) -> (i32, i32, i32) {
    %c0_i32 = arith.constant 0 : i32
    %c0_i32_0 = arith.constant 0 : i32
    return %arg0, %arg1, %c0_i32 : i32, i32, i32
  }
  func.func @transform_1(%arg0: i32, %arg1: i32, %arg2: i32, %arg3: memref<9xi32, #tpu.memory_space<smem>>) -> (i32, i32, i32) {
    %c0_i32 = arith.constant 0 : i32
    %c0_i32_0 = arith.constant 0 : i32
    return %arg0, %arg2, %c0_i32 : i32, i32, i32
  }
  func.func @transform_2(%arg0: i32, %arg1: i32, %arg2: i32, %arg3: memref<9xi32, #tpu.memory_space<smem>>) -> (i32, i32) {
    %c0_i32 = arith.constant 0 : i32
    return %arg1, %arg2 : i32, i32
  }
  func.func @transform_3(%arg0: i32, %arg1: i32, %arg2: i32, %arg3: memref<9xi32, #tpu.memory_space<smem>>) -> (i32, i32) {
    %c0_i32 = arith.constant 0 : i32
    %c0_i32_0 = arith.constant 0 : i32
    return %arg1, %c0_i32 : i32, i32
  }
  func.func @transform_4(%arg0: i32, %arg1: i32, %arg2: i32, %arg3: memref<9xi32, #tpu.memory_space<smem>>) -> (i32, i32) {
    %c0_i32 = arith.constant 0 : i32
    %c0_i32_0 = arith.constant 0 : i32
    %c0_i32_1 = arith.constant 0 : i32
    return %c0_i32, %c0_i32_0 : i32, i32
  }
  func.func @transform_5(%arg0: i32, %arg1: i32, %arg2: i32, %arg3: memref<9xi32, #tpu.memory_space<smem>>) -> (i32, i32) {
    %c0_i32 = arith.constant 0 : i32
    %c0_i32_0 = arith.constant 0 : i32
    %c0_i32_1 = arith.constant 0 : i32
    return %c0_i32, %c0_i32_0 : i32, i32
  }
  func.func @transform_6(%arg0: i32, %arg1: i32, %arg2: i32, %arg3: memref<9xi32, #tpu.memory_space<smem>>) -> (i32, i32, i32) {
    %c0_i32 = arith.constant 0 : i32
    %c0_i32_0 = arith.constant 0 : i32
    return %arg0, %arg1, %c0_i32 : i32, i32, i32
  }
}

</mosaic_0001>

<llo_original>
// kernel: custom-call.4
$region0: #{custom-call.4}
  %s0 = inlined_call_operand.vmem [shape: u32[9], index: 0, kind: output, shape index: {}]

// kernel: complex_forward.4
$region0: #{complex_forward.4}
  #allocation0 [shape = 'u32[]', space=smem, size = 0x4, offset = 0x4, fixed_abs, tag = 'smem constant byte address 0x4 - core index']
  #allocation1 [shape = 'u32[72,128]{1,0:T(1,128)}', space=vmem, size = 0x9000, scoped, tag = 'internal scratch']
  #allocation2 [shape = 's32[1]{0}', space=sflag, size = 0x4, scoped, tag = 'scoped memory for complex_forward.4']
  #allocation3 [shape = 'u8[512]{0}', space=smem, size = 0x200, scoped, tag = 'prefetched SMEM operand 0']
  %s0 = inlined_call_operand.vmem [shape: s32[9], index: 0, kind: input, shape index: {}]
  %s1 = inlined_call_operand.vmem [shape: bf16[2,2304,128], index: 1, kind: input, shape index: {}]
  %s2 = inlined_call_operand.vmem [shape: bf16[8,128,128], index: 2, kind: input, shape index: {}]
  %s3 = inlined_call_operand.vmem [shape: f32[2,2304,1], index: 3, kind: input, shape index: {}]
  %s4 = inlined_call_operand.vmem [shape: bf16[2,2304,128], index: 4, kind: output, shape index: {}]
  %s5 = sld [smem:[#allocation0]]
  $region45: #{complex_forward.4} parent=0
    _
  %s7 = ssub.s32 1, %s5
  %s8 = scalar_select 0, %s7, %s5
  %s10 = sshll.u32 %s0, 4
  %s11 = int_to_ptr.vmem [resolvable:$true] %s10
  %13 = dma.vmem_to_smem %s11, 16, [#allocation3], [#allocation2]
  %15 = dma.done [#allocation2], 16
  %16 = sfence
  loop: start=0, step=1, limit=20
  $region2: #{complex_forward.4} parent=0 // loop_pre_header
    _
  $region3: #{complex_forward.4} parent=0 // loop_header
    %s18 = sphi 0, %s22
    %p19 = scmp.ge.s32.totalorder %s18, 20
    %s25 = sphi 0, %s37
    %s26 = sphi 0, %s33
    %s27 = sphi 0, %s25
    %s28 = sphi 0, %s26
    %s29 = sphi 0, %s27
    %s30 = sphi 0, %s28
    %s42 = sphi 0, %s44
    %s45 = sphi 0, %s42
    %s46 = sphi 0, %s45
    %s62 = sphi 0, %s46
    %s70 = sphi 0, %s72
    %s73 = sphi 0, %s70
    %s74 = sphi 0, %s73
    %s90 = sphi 0, %s74
    %s98 = sphi 0, %s100
    %s101 = sphi 0, %s98
    %s102 = sphi 0, %s101
    %s118 = sphi 0, %s102
    %s126 = sphi 0, %s128
    %s129 = sphi 0, %s126
    %s130 = sphi 0, %s129
    %s146 = sphi 0, %s130
  $region4: #{complex_forward.4} parent=0 // loop_header_branch
    %21 = sbr.rel (%p19) target = $region8
  $region5: #{complex_forward.4} parent=0 // loop_body
    %s23 = ssub.s32 %s18, 1
    %s24 = ssub.s32 %s18, 2
    %s31 = sadd.s32 1, %s26
    %p32 = scmp.ge.s32.totalorder %s31, 9
    %s33 = scalar_select %p32, 0, %s31
    %s34 = sadd.s32 1, %s25
    %s35 = scalar_select %p32, %s34, %s25
    %p36 = scmp.ge.s32.totalorder %s35, 2
    %s37 = scalar_select %p36, 0, %s35
    %s38 = ssub.s32 %s25, %s37
    %s39 = ssub.s32 %s26, %s33
    %s40 = sor.u32 %s38, %s39
    %p41 = scmp.eq.s32.totalorder %s40, 0
    %s43 = sadd.s32 %s42, 1
    %s44 = scalar_select %p41, %s42, %s43
    %p47 = pneg %p41
    %p48 = scmp.eq.s32.totalorder %s18, 17
    %p49 = por %p47, %p48
    %p50 = scmp.ne.s32.totalorder %s42, %s45
    %p51 = scmp.eq.s32.totalorder %s18, 0
    %p52 = por %p50, %p51
    %p53 = scmp.ne.s32.totalorder %s42, %s45
    %p54 = scmp.eq.s32.totalorder %s23, 17
    %p55 = por %p53, %p54
    %p56 = scmp.ne.s32.totalorder %s45, %s46
    %p57 = scmp.eq.s32.totalorder %s23, 0
    %p58 = por %p56, %p57
    %p59 = scmp.ne.s32.totalorder %s45, %s46
    %p60 = scmp.eq.s32.totalorder %s24, 17
    %p61 = por %p59, %p60
    %p63 = scmp.ne.s32.totalorder %s46, %s62
    %p64 = scmp.eq.s32.totalorder %s24, 0
    %p65 = por %p63, %p64
    %s66 = sld [smem:[#allocation3 + %s26]]
    %s67 = sld [smem:[#allocation3 + %s33]]
    %s68 = ssub.s32 %s66, %s67
    %p69 = scmp.eq.s32.totalorder %s68, 0
    %s71 = sadd.s32 %s70, 1
    %s72 = scalar_select %p69, %s70, %s71
    %p75 = pneg %p69
    %p76 = scmp.eq.s32.totalorder %s18, 17
    %p77 = por %p75, %p76
    %p78 = scmp.ne.s32.totalorder %s70, %s73
    %p79 = scmp.eq.s32.totalorder %s18, 0
    %p80 = por %p78, %p79
    %p81 = scmp.ne.s32.totalorder %s70, %s73
    %p82 = scmp.eq.s32.totalorder %s23, 17
    %p83 = por %p81, %p82
    %p84 = scmp.ne.s32.totalorder %s73, %s74
    %p85 = scmp.eq.s32.totalorder %s23, 0
    %p86 = por %p84, %p85
    %p87 = scmp.ne.s32.totalorder %s73, %s74
    %p88 = scmp.eq.s32.totalorder %s24, 17
    %p89 = por %p87, %p88
    %p91 = scmp.ne.s32.totalorder %s74, %s90
    %p92 = scmp.eq.s32.totalorder %s24, 0
    %p93 = por %p91, %p92
    %s94 = ssub.s32 %s25, %s37
    %s95 = ssub.s32 %s26, %s33
    %s96 = sor.u32 %s94, %s95
    %p97 = scmp.eq.s32.totalorder %s96, 0
    %s99 = sadd.s32 %s98, 1
    %s100 = scalar_select %p97, %s98, %s99
    %p103 = pneg %p97
    %p104 = scmp.eq.s32.totalorder %s18, 17
    %p105 = por %p103, %p104
    %p106 = scmp.ne.s32.totalorder %s98, %s101
    %p107 = scmp.eq.s32.totalorder %s18, 0
    %p108 = por %p106, %p107
    %p109 = scmp.ne.s32.totalorder %s98, %s101
    %p110 = scmp.eq.s32.totalorder %s23, 17
    %p111 = por %p109, %p110
    %p112 = scmp.ne.s32.totalorder %s101, %s102
    %p113 = scmp.eq.s32.totalorder %s23, 0
    %p114 = por %p112, %p113
    %p115 = scmp.ne.s32.totalorder %s101, %s102
    %p116 = scmp.eq.s32.totalorder %s24, 17
    %p117 = por %p115, %p116
    %p119 = scmp.ne.s32.totalorder %s102, %s118
    %p120 = scmp.eq.s32.totalorder %s24, 0
    %p121 = por %p119, %p120
    %s122 = ssub.s32 %s25, %s37
    %s123 = ssub.s32 %s26, %s33
    %s124 = sor.u32 %s122, %s123
    %p125 = scmp.eq.s32.totalorder %s124, 0
    %s127 = sadd.s32 %s126, 1
    %s128 = scalar_select %p125, %s126, %s127
    %p131 = pneg %p125
    %p132 = scmp.eq.s32.totalorder %s18, 17
    %p133 = por %p131, %p132
    %p134 = scmp.ne.s32.totalorder %s126, %s129
    %p135 = scmp.eq.s32.totalorder %s18, 0
    %p136 = por %p134, %p135
    %p137 = scmp.ne.s32.totalorder %s126, %s129
    %p138 = scmp.eq.s32.totalorder %s23, 17
    %p139 = por %p137, %p138
    %p140 = scmp.ne.s32.totalorder %s129, %s130
    %p141 = scmp.eq.s32.totalorder %s23, 0
    %p142 = por %p140, %p141
    %p143 = scmp.ne.s32.totalorder %s129, %s130
    %p144 = scmp.eq.s32.totalorder %s24, 17
    %p145 = por %p143, %p144
    %p147 = scmp.ne.s32.totalorder %s130, %s146
    %p148 = scmp.eq.s32.totalorder %s24, 0
    %p149 = por %p147, %p148
    %p150 = scmp.le.s32.totalorder 1, %s18
    %p151 = scmp.lt.s32.totalorder %s18, 19
    %p152 = pnand %p150, %p151
    %p153 = pneg %p152
    // Predicated region
    $region9: #{complex_forward.4} parent=5 // pred_check
      _
    $region10: #{complex_forward.4} parent=5 // pred_check_branch
      %155 = sbr.rel (%p152) target = $region12
    $region11: #{complex_forward.4} parent=5 // pred_region
      %s156 = ssub.s32 %s18, 1
    $region12: #{complex_forward.4} parent=5 // pred_fallthru
      _
    %p157 = scmp.lt.s32.totalorder %s18, 18
    // Predicated region
    $region13: #{complex_forward.4} parent=5 // pred_check
      %p158 = pneg %p157
    $region14: #{complex_forward.4} parent=5 // pred_check_branch
      %160 = sbr.rel (%p158) target = $region16
    $region15: #{complex_forward.4} parent=5 // pred_region
      // Predicated region
      $region17: #{complex_forward.4} parent=15 // pred_check
        %p161 = pneg %p52
      $region18: #{complex_forward.4} parent=15 // pred_check_branch
        %163 = sbr.rel (%p161) target = $region20
      $region19: #{complex_forward.4} parent=15 // pred_region
        %s164 = smul.u32 32, %s26
        %p165 = scmp.lt.s32.totalorder %s25, 1
        %s166 = scalar_select %p165, %s25, 1
        %p167 = scmp.lt.s32.totalorder %s164, 287
        %s168 = scalar_select %p167, %s164, 287
        %s169 = smul.addr %s166, 288
        %s170 = sadd.s32 %s168, %s169
        %s171 = smul.addr %s170, 4
        %s172 = scalar_lea.vmem %s1, %s171
        %s173 = smul.u32 32, %s26
      $region20: #{complex_forward.4} parent=15 // pred_fallthru
        _
      // Predicated region
      $region21: #{complex_forward.4} parent=15 // pred_check
        %p174 = pneg %p80
      $region22: #{complex_forward.4} parent=15 // pred_check_branch
        %176 = sbr.rel (%p174) target = $region24
      $region23: #{complex_forward.4} parent=15 // pred_region
        %s177 = sld [smem:[#allocation3 + %s26]]
        %p178 = scmp.lt.s32.totalorder %s177, 7
        %s179 = scalar_select %p178, %s177, 7
        %s180 = smul.addr %s179, 16
        %s181 = smul.addr %s180, 4
        %s182 = scalar_lea.vmem %s2, %s181
        %s183 = sld [smem:[#allocation3 + %s26]]
      $region24: #{complex_forward.4} parent=15 // pred_fallthru
        _
      // Predicated region
      $region25: #{complex_forward.4} parent=15 // pred_check
        %p184 = pneg %p108
      $region26: #{complex_forward.4} parent=15 // pred_check_branch
        %186 = sbr.rel (%p184) target = $region28
      $region27: #{complex_forward.4} parent=15 // pred_region
        %s187 = smul.u32 32, %s26
        %p188 = scmp.lt.s32.totalorder %s25, 1
        %s189 = scalar_select %p188, %s25, 1
        %p190 = scmp.lt.s32.totalorder %s187, 287
        %s191 = scalar_select %p190, %s187, 287
        %s192 = smul.addr %s189, 288
        %s193 = sadd.s32 %s191, %s192
        %s194 = smul.addr %s193, 8
        %s195 = scalar_lea.vmem %s3, %s194
        %s196 = smul.u32 32, %s26
      $region28: #{complex_forward.4} parent=15 // pred_fallthru
        _
    $region16: #{complex_forward.4} parent=5 // pred_fallthru
      _
    %p197 = scmp.le.s32.totalorder 1, %s18
    %p198 = scmp.lt.s32.totalorder %s18, 19
    %p199 = pnand %p197, %p198
    %p200 = pneg %p199
    // Predicated region
    $region29: #{complex_forward.4} parent=5 // pred_check
      _
    $region30: #{complex_forward.4} parent=5 // pred_check_branch
      %202 = sbr.rel (%p199) target = $region32
    $region31: #{complex_forward.4} parent=5 // pred_region
      %s203 = ssub.s32 %s18, 1
      %s204 = smul.u32 32, %s28
      %p205 = scmp.lt.s32.totalorder %s27, 1
      %s206 = scalar_select %p205, %s27, 1
      %p207 = scmp.lt.s32.totalorder %s204, 287
      %s208 = scalar_select %p207, %s204, 287
      %s209 = smul.addr %s206, 288
      %s210 = sadd.s32 %s208, %s209
      %s211 = smul.addr %s210, 4
      %s212 = scalar_lea.vmem %s1, %s211
      %p213 = pneg %p58
      %p214 = pneg %p55
      %s215 = sld [smem:[#allocation3 + %s28]]
      %p216 = scmp.lt.s32.totalorder %s215, 7
      %s217 = scalar_select %p216, %s215, 7
      %s218 = smul.addr %s217, 16
      %s219 = smul.addr %s218, 4
      %s220 = scalar_lea.vmem %s2, %s219
      %p221 = pneg %p86
      %p222 = pneg %p83
      %s223 = smul.u32 32, %s28
      %p224 = scmp.lt.s32.totalorder %s27, 1
      %s225 = scalar_select %p224, %s27, 1
      %p226 = scmp.lt.s32.totalorder %s223, 287
      %s227 = scalar_select %p226, %s223, 287
      %s228 = smul.addr %s225, 288
      %s229 = sadd.s32 %s227, %s228
      %s230 = smul.addr %s229, 8
      %s231 = scalar_lea.vmem %s3, %s230
      %p232 = pneg %p114
      %p233 = pneg %p111
      %p234 = pneg %p142
      %p235 = pneg %p139
      %s236 = smul.u32 32, %s28
      %p237 = scmp.lt.s32.totalorder %s27, 1
      %s238 = scalar_select %p237, %s27, 1
      %p239 = scmp.lt.s32.totalorder %s236, 287
      %s240 = scalar_select %p239, %s236, 287
      %s241 = smul.addr %s238, 288
      %s242 = sadd.s32 %s240, %s241
      %s243 = smul.addr %s242, 4
      %s244 = scalar_lea.vmem %s4, %s243
      %s245 = smul.u32 32, %s28
      %p246 = scmp.lt.s32.totalorder %s27, 1
      %s247 = scalar_select %p246, %s27, 1
      %p248 = scmp.lt.s32.totalorder %s245, 287
      %s249 = scalar_select %p248, %s245, 287
      %s250 = smul.addr %s247, 288
      %s251 = sadd.s32 %s249, %s250
      %s252 = smul.addr %s251, 4
      %s253 = scalar_lea.vmem %s1, %s252
      %s254 = smul.u32 32, %s28
      %s255 = sld [smem:[#allocation3 + %s28]]
      %p256 = scmp.lt.s32.totalorder %s255, 7
      %s257 = scalar_select %p256, %s255, 7
      %s258 = smul.addr %s257, 16
      %s259 = smul.addr %s258, 4
      %s260 = scalar_lea.vmem %s2, %s259
      %s261 = sld [smem:[#allocation3 + %s28]]
      %s262 = smul.u32 32, %s28
      %p263 = scmp.lt.s32.totalorder %s27, 1
      %s264 = scalar_select %p263, %s27, 1
      %p265 = scmp.lt.s32.totalorder %s262, 287
      %s266 = scalar_select %p265, %s262, 287
      %s267 = smul.addr %s264, 288
      %s268 = sadd.s32 %s266, %s267
      %s269 = smul.addr %s268, 8
      %s270 = scalar_lea.vmem %s3, %s269
      %s271 = smul.u32 32, %s28
      %s272 = smul.u32 32, %s28
      %p273 = scmp.lt.s32.totalorder %s27, 1
      %s274 = scalar_select %p273, %s27, 1
      %p275 = scmp.lt.s32.totalorder %s272, 287
      %s276 = scalar_select %p275, %s272, 287
      %s277 = smul.addr %s274, 288
      %s278 = sadd.s32 %s276, %s277
      %s279 = smul.addr %s278, 4
      %s280 = scalar_lea.vmem %s4, %s279
      %s281 = smul.u32 32, %s28
      %v282 = vld [vmem:[%s253] sm:$0xf]
      %v283 = vld [vmem:[%s253 + $0x4] sm:$0xf]
      %v284 = vld [vmem:[%s253 + $0x8] sm:$0xf]
      %v285 = vld [vmem:[%s253 + $0xc] sm:$0xf]
      %v286 = vld [vmem:[%s253 + $0x10] sm:$0xf]
      %v287 = vld [vmem:[%s253 + $0x14] sm:$0xf]
      %v288 = vld [vmem:[%s253 + $0x18] sm:$0xf]
      %v289 = vld [vmem:[%s253 + $0x1c] sm:$0xf]
      %v290 = vld [vmem:[%s253 + $0x20] sm:$0xf]
      %v291 = vld [vmem:[%s253 + $0x24] sm:$0xf]
      %v292 = vld [vmem:[%s253 + $0x28] sm:$0xf]
      %v293 = vld [vmem:[%s253 + $0x2c] sm:$0xf]
      %v294 = vld [vmem:[%s253 + $0x30] sm:$0xf]
      %v295 = vld [vmem:[%s253 + $0x34] sm:$0xf]
      %v296 = vld [vmem:[%s253 + $0x38] sm:$0xf]
      %v297 = vld [vmem:[%s253 + $0x3c] sm:$0xf]
      %v298 = vld [vmem:[%s253 + $0x40] sm:$0xf]
      %v299 = vld [vmem:[%s253 + $0x44] sm:$0xf]
      %v300 = vld [vmem:[%s253 + $0x48] sm:$0xf]
      %v301 = vld [vmem:[%s253 + $0x4c] sm:$0xf]
      %v302 = vld [vmem:[%s253 + $0x50] sm:$0xf]
      %v303 = vld [vmem:[%s253 + $0x54] sm:$0xf]
      %v304 = vld [vmem:[%s253 + $0x58] sm:$0xf]
      %v305 = vld [vmem:[%s253 + $0x5c] sm:$0xf]
      %v306 = vld [vmem:[%s253 + $0x60] sm:$0xf]
      %v307 = vld [vmem:[%s253 + $0x64] sm:$0xf]
      %v308 = vld [vmem:[%s253 + $0x68] sm:$0xf]
      %v309 = vld [vmem:[%s253 + $0x6c] sm:$0xf]
      %v310 = vld [vmem:[%s253 + $0x70] sm:$0xf]
      %v311 = vld [vmem:[%s253 + $0x74] sm:$0xf]
      %v312 = vld [vmem:[%s253 + $0x78] sm:$0xf]
      %v313 = vld [vmem:[%s253 + $0x7c] sm:$0xf]
      %v314 = vld [vmem:[%s260] sm:$0xf]
      %v315 = vld [vmem:[%s260 + $0x4] sm:$0xf]
      %v316 = vld [vmem:[%s260 + $0x8] sm:$0xf]
      %v317 = vld [vmem:[%s260 + $0xc] sm:$0xf]
      %v318 = vld [vmem:[%s260 + $0x10] sm:$0xf]
      %v319 = vld [vmem:[%s260 + $0x14] sm:$0xf]
      %v320 = vld [vmem:[%s260 + $0x18] sm:$0xf]
      %v321 = vld [vmem:[%s260 + $0x1c] sm:$0xf]
      %v322 = vld [vmem:[%s260 + $0x20] sm:$0xf]
      %v323 = vld [vmem:[%s260 + $0x24] sm:$0xf]
      %v324 = vld [vmem:[%s260 + $0x28] sm:$0xf]
      %v325 = vld [vmem:[%s260 + $0x2c] sm:$0xf]
      %v326 = vld [vmem:[%s260 + $0x30] sm:$0xf]
      %v327 = vld [vmem:[%s260 + $0x34] sm:$0xf]
      %v328 = vld [vmem:[%s260 + $0x38] sm:$0xf]
      %v329 = vld [vmem:[%s260 + $0x3c] sm:$0xf]
      %v362 = vunpack.c.l.b16 %v282
      %v363 = vunpack.c.l.b16 %v283
      %v364 = vunpack.c.l.b16 %v284
      %v365 = vunpack.c.l.b16 %v285
      %v366 = vunpack.c.l.b16 %v286
      %v367 = vunpack.c.l.b16 %v287
      %v368 = vunpack.c.l.b16 %v288
      %v369 = vunpack.c.l.b16 %v289
      %v370 = vunpack.c.l.b16 %v290
      %v371 = vunpack.c.l.b16 %v291
      %v372 = vunpack.c.l.b16 %v292
      %v373 = vunpack.c.l.b16 %v293
      %v374 = vunpack.c.l.b16 %v294
      %v375 = vunpack.c.l.b16 %v295
      %v376 = vunpack.c.l.b16 %v296
      %v377 = vunpack.c.l.b16 %v297
      %v378 = vunpack.c.l.b16 %v298
      %v379 = vunpack.c.l.b16 %v299
      %v380 = vunpack.c.l.b16 %v300
      %v381 = vunpack.c.l.b16 %v301
      %v382 = vunpack.c.l.b16 %v302
      %v383 = vunpack.c.l.b16 %v303
      %v384 = vunpack.c.l.b16 %v304
      %v385 = vunpack.c.l.b16 %v305
      %v386 = vunpack.c.l.b16 %v306
      %v387 = vunpack.c.l.b16 %v307
      %v388 = vunpack.c.l.b16 %v308
      %v389 = vunpack.c.l.b16 %v309
      %v390 = vunpack.c.l.b16 %v310
      %v391 = vunpack.c.l.b16 %v311
      %v392 = vunpack.c.l.b16 %v312
      %v393 = vunpack.c.l.b16 %v313
      %v394 = vpack.c.b16 %v363, %v362
      %v395 = vpack.c.b16 %v365, %v364
      %v396 = vpack.c.b16 %v367, %v366
      %v397 = vpack.c.b16 %v369, %v368
      %v398 = vpack.c.b16 %v371, %v370
      %v399 = vpack.c.b16 %v373, %v372
      %v400 = vpack.c.b16 %v375, %v374
      %v401 = vpack.c.b16 %v377, %v376
      %v402 = vpack.c.b16 %v379, %v378
      %v403 = vpack.c.b16 %v381, %v380
      %v404 = vpack.c.b16 %v383, %v382
      %v405 = vpack.c.b16 %v385, %v384
      %v406 = vpack.c.b16 %v387, %v386
      %v407 = vpack.c.b16 %v389, %v388
      %v408 = vpack.c.b16 %v391, %v390
      %v409 = vpack.c.b16 %v393, %v392
      %v442 = vunpack.c.l.b16 %v314
      %v443 = vunpack.c.l.b16 %v315
      %v444 = vunpack.c.l.b16 %v316
      %v445 = vunpack.c.l.b16 %v317
      %v446 = vunpack.c.l.b16 %v318
      %v447 = vunpack.c.l.b16 %v319
      %v448 = vunpack.c.l.b16 %v320
      %v449 = vunpack.c.l.b16 %v321
      %v450 = vunpack.c.l.b16 %v322
      %v451 = vunpack.c.l.b16 %v323
      %v452 = vunpack.c.l.b16 %v324
      %v453 = vunpack.c.l.b16 %v325
      %v454 = vunpack.c.l.b16 %v326
      %v455 = vunpack.c.l.b16 %v327
      %v456 = vunpack.c.l.b16 %v328
      %v457 = vunpack.c.l.b16 %v329
      %v458 = vpack.c.b16 %v443, %v442
      %v459 = vpack.c.b16 %v445, %v444
      %v460 = vpack.c.b16 %v447, %v446
      %v461 = vpack.c.b16 %v449, %v448
      %v462 = vpack.c.b16 %v451, %v450
      %v463 = vpack.c.b16 %v453, %v452
      %v464 = vpack.c.b16 %v455, %v454
      %v465 = vpack.c.b16 %v457, %v456
      %474 = vmatpush.bf16.msra.mxu0 %v465
      %475 = vmatpush.bf16.msra.mxu0 %v464
      %476 = vmatpush.bf16.msra.mxu0 %v463
      %477 = vmatpush.bf16.msra.mxu0 %v462
      %478 = vmatpush.bf16.msra.mxu0 %v461
      %479 = vmatpush.bf16.msra.mxu0 %v460
      %480 = vmatpush.bf16.msra.mxu0 %v459
      %481 = vmatpush.bf16.msra.mxu0 %v458
      %482 = vmatmul.bf16.gmra.mxu0 %v394
      %v483 = vpop.f32.mrf.mxu0
      %v484 = vadd.f32 0.0, %v483
      %v485 = vpop.f32.mrf.mxu0
      %v486 = vadd.f32 0.0, %v485
      %487 = vmatmul.bf16.gmra.mxu0 %v395
      %v488 = vpop.f32.mrf.mxu0
      %v489 = vadd.f32 0.0, %v488
      %v490 = vpop.f32.mrf.mxu0
      %v491 = vadd.f32 0.0, %v490
      %492 = vmatmul.bf16.gmra.mxu0 %v396
      %v493 = vpop.f32.mrf.mxu0
      %v494 = vadd.f32 0.0, %v493
      %v495 = vpop.f32.mrf.mxu0
      %v496 = vadd.f32 0.0, %v495
      %497 = vmatmul.bf16.gmra.mxu0 %v397
      %v498 = vpop.f32.mrf.mxu0
      %v499 = vadd.f32 0.0, %v498
      %v500 = vpop.f32.mrf.mxu0
      %v501 = vadd.f32 0.0, %v500
      %502 = vmatmul.bf16.gmra.mxu0 %v398
      %v503 = vpop.f32.mrf.mxu0
      %v504 = vadd.f32 0.0, %v503
      %v505 = vpop.f32.mrf.mxu0
      %v506 = vadd.f32 0.0, %v505
      %507 = vmatmul.bf16.gmra.mxu0 %v399
      %v508 = vpop.f32.mrf.mxu0
      %v509 = vadd.f32 0.0, %v508
      %v510 = vpop.f32.mrf.mxu0
      %v511 = vadd.f32 0.0, %v510
      %512 = vmatmul.bf16.gmra.mxu0 %v400
      %v513 = vpop.f32.mrf.mxu0
      %v514 = vadd.f32 0.0, %v513
      %v515 = vpop.f32.mrf.mxu0
      %v516 = vadd.f32 0.0, %v515
      %517 = vmatmul.bf16.gmra.mxu0 %v401
      %v518 = vpop.f32.mrf.mxu0
      %v519 = vadd.f32 0.0, %v518
      %v520 = vpop.f32.mrf.mxu0
      %v521 = vadd.f32 0.0, %v520
      %522 = vmatmul.bf16.gmra.mxu0 %v402
      %v523 = vpop.f32.mrf.mxu0
      %v524 = vadd.f32 0.0, %v523
      %v525 = vpop.f32.mrf.mxu0
      %v526 = vadd.f32 0.0, %v525
      %527 = vmatmul.bf16.gmra.mxu0 %v403
      %v528 = vpop.f32.mrf.mxu0
      %v529 = vadd.f32 0.0, %v528
      %v530 = vpop.f32.mrf.mxu0
      %v531 = vadd.f32 0.0, %v530
      %532 = vmatmul.bf16.gmra.mxu0 %v404
      %v533 = vpop.f32.mrf.mxu0
      %v534 = vadd.f32 0.0, %v533
      %v535 = vpop.f32.mrf.mxu0
      %v536 = vadd.f32 0.0, %v535
      %537 = vmatmul.bf16.gmra.mxu0 %v405
      %v538 = vpop.f32.mrf.mxu0
      %v539 = vadd.f32 0.0, %v538
      %v540 = vpop.f32.mrf.mxu0
      %v541 = vadd.f32 0.0, %v540
      %542 = vmatmul.bf16.gmra.mxu0 %v406
      %v543 = vpop.f32.mrf.mxu0
      %v544 = vadd.f32 0.0, %v543
      %v545 = vpop.f32.mrf.mxu0
      %v546 = vadd.f32 0.0, %v545
      %547 = vmatmul.bf16.gmra.mxu0 %v407
      %v548 = vpop.f32.mrf.mxu0
      %v549 = vadd.f32 0.0, %v548
      %v550 = vpop.f32.mrf.mxu0
      %v551 = vadd.f32 0.0, %v550
      %552 = vmatmul.bf16.gmra.mxu0 %v408
      %v553 = vpop.f32.mrf.mxu0
      %v554 = vadd.f32 0.0, %v553
      %v555 = vpop.f32.mrf.mxu0
      %v556 = vadd.f32 0.0, %v555
      %557 = vmatmul.bf16.gmra.mxu0 %v409
      %v558 = vpop.f32.mrf.mxu0
      %v559 = vadd.f32 0.0, %v558
      %v560 = vpop.f32.mrf.mxu0
      %v561 = vadd.f32 0.0, %v560
      %562 = vdwg.mxu0
      %v563 = vld [vmem:[%s270] sm:$0xff]
      %v564 = vld [vmem:[%s270 + $0x8] sm:$0xff]
      %v565 = vld [vmem:[%s270 + $0x10] sm:$0xff]
      %v566 = vld [vmem:[%s270 + $0x18] sm:$0xff]
      %v567 = vld [vmem:[%s270 + $0x20] sm:$0xff]
      %v568 = vld [vmem:[%s270 + $0x28] sm:$0xff]
      %v569 = vld [vmem:[%s270 + $0x30] sm:$0xff]
      %v570 = vld [vmem:[%s270 + $0x38] sm:$0xff]
      %v571 = vld [vmem:[%s270 + $0x40] sm:$0xff]
      %v572 = vld [vmem:[%s270 + $0x48] sm:$0xff]
      %v573 = vld [vmem:[%s270 + $0x50] sm:$0xff]
      %v574 = vld [vmem:[%s270 + $0x58] sm:$0xff]
      %v575 = vld [vmem:[%s270 + $0x60] sm:$0xff]
      %v576 = vld [vmem:[%s270 + $0x68] sm:$0xff]
      %v577 = vld [vmem:[%s270 + $0x70] sm:$0xff]
      %v578 = vld [vmem:[%s270 + $0x78] sm:$0xff]
      %v579 = vld [vmem:[%s270 + $0x80] sm:$0xff]
      %v580 = vld [vmem:[%s270 + $0x88] sm:$0xff]
      %v581 = vld [vmem:[%s270 + $0x90] sm:$0xff]
      %v582 = vld [vmem:[%s270 + $0x98] sm:$0xff]
      %v583 = vld [vmem:[%s270 + $0xa0] sm:$0xff]
      %v584 = vld [vmem:[%s270 + $0xa8] sm:$0xff]
      %v585 = vld [vmem:[%s270 + $0xb0] sm:$0xff]
      %v586 = vld [vmem:[%s270 + $0xb8] sm:$0xff]
      %v587 = vld [vmem:[%s270 + $0xc0] sm:$0xff]
      %v588 = vld [vmem:[%s270 + $0xc8] sm:$0xff]
      %v589 = vld [vmem:[%s270 + $0xd0] sm:$0xff]
      %v590 = vld [vmem:[%s270 + $0xd8] sm:$0xff]
      %v591 = vld [vmem:[%s270 + $0xe0] sm:$0xff]
      %v592 = vld [vmem:[%s270 + $0xe8] sm:$0xff]
      %v593 = vld [vmem:[%s270 + $0xf0] sm:$0xff]
      %v594 = vld [vmem:[%s270 + $0xf8] sm:$0xff]
      %596 = vset.pattern.permute.xlu0 0
      %597 = vperm.xlu0 %596, %v563
      %v598 = vpop.permute.xlu0 %597
      %601 = vset.pattern.permute.xlu0 0
      %602 = vperm.xlu0 %601, %v564
      %v603 = vpop.permute.xlu0 %602
      %606 = vset.pattern.permute.xlu0 0
      %607 = vperm.xlu0 %606, %v565
      %v608 = vpop.permute.xlu0 %607
      %611 = vset.pattern.permute.xlu0 0
      %612 = vperm.xlu0 %611, %v566
      %v613 = vpop.permute.xlu0 %612
      %616 = vset.pattern.permute.xlu0 0
      %617 = vperm.xlu0 %616, %v567
      %v618 = vpop.permute.xlu0 %617
      %621 = vset.pattern.permute.xlu0 0
      %622 = vperm.xlu0 %621, %v568
      %v623 = vpop.permute.xlu0 %622
      %626 = vset.pattern.permute.xlu0 0
      %627 = vperm.xlu0 %626, %v569
      %v628 = vpop.permute.xlu0 %627
      %631 = vset.pattern.permute.xlu0 0
      %632 = vperm.xlu0 %631, %v570
      %v633 = vpop.permute.xlu0 %632
      %636 = vset.pattern.permute.xlu0 0
      %637 = vperm.xlu0 %636, %v571
      %v638 = vpop.permute.xlu0 %637
      %641 = vset.pattern.permute.xlu0 0
      %642 = vperm.xlu0 %641, %v572
      %v643 = vpop.permute.xlu0 %642
      %646 = vset.pattern.permute.xlu0 0
      %647 = vperm.xlu0 %646, %v573
      %v648 = vpop.permute.xlu0 %647
      %651 = vset.pattern.permute.xlu0 0
      %652 = vperm.xlu0 %651, %v574
      %v653 = vpop.permute.xlu0 %652
      %656 = vset.pattern.permute.xlu0 0
      %657 = vperm.xlu0 %656, %v575
      %v658 = vpop.permute.xlu0 %657
      %661 = vset.pattern.permute.xlu0 0
      %662 = vperm.xlu0 %661, %v576
      %v663 = vpop.permute.xlu0 %662
      %666 = vset.pattern.permute.xlu0 0
      %667 = vperm.xlu0 %666, %v577
      %v668 = vpop.permute.xlu0 %667
      %671 = vset.pattern.permute.xlu0 0
      %672 = vperm.xlu0 %671, %v578
      %v673 = vpop.permute.xlu0 %672
      %676 = vset.pattern.permute.xlu0 0
      %677 = vperm.xlu0 %676, %v579
      %v678 = vpop.permute.xlu0 %677
      %681 = vset.pattern.permute.xlu0 0
      %682 = vperm.xlu0 %681, %v580
      %v683 = vpop.permute.xlu0 %682
      %686 = vset.pattern.permute.xlu0 0
      %687 = vperm.xlu0 %686, %v581
      %v688 = vpop.permute.xlu0 %687
      %691 = vset.pattern.permute.xlu0 0
      %692 = vperm.xlu0 %691, %v582
      %v693 = vpop.permute.xlu0 %692
      %696 = vset.pattern.permute.xlu0 0
      %697 = vperm.xlu0 %696, %v583
      %v698 = vpop.permute.xlu0 %697
      %701 = vset.pattern.permute.xlu0 0
      %702 = vperm.xlu0 %701, %v584
      %v703 = vpop.permute.xlu0 %702
      %706 = vset.pattern.permute.xlu0 0
      %707 = vperm.xlu0 %706, %v585
      %v708 = vpop.permute.xlu0 %707
      %711 = vset.pattern.permute.xlu0 0
      %712 = vperm.xlu0 %711, %v586
      %v713 = vpop.permute.xlu0 %712
      %716 = vset.pattern.permute.xlu0 0
      %717 = vperm.xlu0 %716, %v587
      %v718 = vpop.permute.xlu0 %717
      %721 = vset.pattern.permute.xlu0 0
      %722 = vperm.xlu0 %721, %v588
      %v723 = vpop.permute.xlu0 %722
      %726 = vset.pattern.permute.xlu0 0
      %727 = vperm.xlu0 %726, %v589
      %v728 = vpop.permute.xlu0 %727
      %731 = vset.pattern.permute.xlu0 0
      %732 = vperm.xlu0 %731, %v590
      %v733 = vpop.permute.xlu0 %732
      %736 = vset.pattern.permute.xlu0 0
      %737 = vperm.xlu0 %736, %v591
      %v738 = vpop.permute.xlu0 %737
      %741 = vset.pattern.permute.xlu0 0
      %742 = vperm.xlu0 %741, %v592
      %v743 = vpop.permute.xlu0 %742
      %746 = vset.pattern.permute.xlu0 0
      %747 = vperm.xlu0 %746, %v593
      %v748 = vpop.permute.xlu0 %747
      %751 = vset.pattern.permute.xlu0 0
      %752 = vperm.xlu0 %751, %v594
      %v753 = vpop.permute.xlu0 %752
      %v755 = vmul.f32 %v484, %v598
      %v756 = vmul.f32 %v486, %v603
      %v757 = vmul.f32 %v489, %v608
      %v758 = vmul.f32 %v491, %v613
      %v759 = vmul.f32 %v494, %v618
      %v760 = vmul.f32 %v496, %v623
      %v761 = vmul.f32 %v499, %v628
      %v762 = vmul.f32 %v501, %v633
      %v763 = vmul.f32 %v504, %v638
      %v764 = vmul.f32 %v506, %v643
      %v765 = vmul.f32 %v509, %v648
      %v766 = vmul.f32 %v511, %v653
      %v767 = vmul.f32 %v514, %v658
      %v768 = vmul.f32 %v516, %v663
      %v769 = vmul.f32 %v519, %v668
      %v770 = vmul.f32 %v521, %v673
      %v771 = vmul.f32 %v524, %v678
      %v772 = vmul.f32 %v526, %v683
      %v773 = vmul.f32 %v529, %v688
      %v774 = vmul.f32 %v531, %v693
      %v775 = vmul.f32 %v534, %v698
      %v776 = vmul.f32 %v536, %v703
      %v777 = vmul.f32 %v539, %v708
      %v778 = vmul.f32 %v541, %v713
      %v779 = vmul.f32 %v544, %v718
      %v780 = vmul.f32 %v546, %v723
      %v781 = vmul.f32 %v549, %v728
      %v782 = vmul.f32 %v551, %v733
      %v783 = vmul.f32 %v554, %v738
      %v784 = vmul.f32 %v556, %v743
      %v785 = vmul.f32 %v559, %v748
      %v786 = vmul.f32 %v561, %v753
      %v787 = vpack.c.bf16 %v755, %v755
      %v788 = vpack.c.bf16 %v756, %v756
      %v789 = vpack.c.bf16 %v757, %v757
      %v790 = vpack.c.bf16 %v758, %v758
      %v791 = vpack.c.bf16 %v759, %v759
      %v792 = vpack.c.bf16 %v760, %v760
      %v793 = vpack.c.bf16 %v761, %v761
      %v794 = vpack.c.bf16 %v762, %v762
      %v795 = vpack.c.bf16 %v763, %v763
      %v796 = vpack.c.bf16 %v764, %v764
      %v797 = vpack.c.bf16 %v765, %v765
      %v798 = vpack.c.bf16 %v766, %v766
      %v799 = vpack.c.bf16 %v767, %v767
      %v800 = vpack.c.bf16 %v768, %v768
      %v801 = vpack.c.bf16 %v769, %v769
      %v802 = vpack.c.bf16 %v770, %v770
      %v803 = vpack.c.bf16 %v771, %v771
      %v804 = vpack.c.bf16 %v772, %v772
      %v805 = vpack.c.bf16 %v773, %v773
      %v806 = vpack.c.bf16 %v774, %v774
      %v807 = vpack.c.bf16 %v775, %v775
      %v808 = vpack.c.bf16 %v776, %v776
      %v809 = vpack.c.bf16 %v777, %v777
      %v810 = vpack.c.bf16 %v778, %v778
      %v811 = vpack.c.bf16 %v779, %v779
      %v812 = vpack.c.bf16 %v780, %v780
      %v813 = vpack.c.bf16 %v781, %v781
      %v814 = vpack.c.bf16 %v782, %v782
      %v815 = vpack.c.bf16 %v783, %v783
      %v816 = vpack.c.bf16 %v784, %v784
      %v817 = vpack.c.bf16 %v785, %v785
      %v818 = vpack.c.bf16 %v786, %v786
      %819 = vst [vmem:[%s280] sm:$0xf] %v787
      %820 = vst [vmem:[%s280 + $0x4] sm:$0xf] %v788
      %821 = vst [vmem:[%s280 + $0x8] sm:$0xf] %v789
      %822 = vst [vmem:[%s280 + $0xc] sm:$0xf] %v790
      %823 = vst [vmem:[%s280 + $0x10] sm:$0xf] %v791
      %824 = vst [vmem:[%s280 + $0x14] sm:$0xf] %v792
      %825 = vst [vmem:[%s280 + $0x18] sm:$0xf] %v793
      %826 = vst [vmem:[%s280 + $0x1c] sm:$0xf] %v794
      %827 = vst [vmem:[%s280 + $0x20] sm:$0xf] %v795
      %828 = vst [vmem:[%s280 + $0x24] sm:$0xf] %v796
      %829 = vst [vmem:[%s280 + $0x28] sm:$0xf] %v797
      %830 = vst [vmem:[%s280 + $0x2c] sm:$0xf] %v798
      %831 = vst [vmem:[%s280 + $0x30] sm:$0xf] %v799
      %832 = vst [vmem:[%s280 + $0x34] sm:$0xf] %v800
      %833 = vst [vmem:[%s280 + $0x38] sm:$0xf] %v801
      %834 = vst [vmem:[%s280 + $0x3c] sm:$0xf] %v802
      %835 = vst [vmem:[%s280 + $0x40] sm:$0xf] %v803
      %836 = vst [vmem:[%s280 + $0x44] sm:$0xf] %v804
      %837 = vst [vmem:[%s280 + $0x48] sm:$0xf] %v805
      %838 = vst [vmem:[%s280 + $0x4c] sm:$0xf] %v806
      %839 = vst [vmem:[%s280 + $0x50] sm:$0xf] %v807
      %840 = vst [vmem:[%s280 + $0x54] sm:$0xf] %v808
      %841 = vst [vmem:[%s280 + $0x58] sm:$0xf] %v809
      %842 = vst [vmem:[%s280 + $0x5c] sm:$0xf] %v810
      %843 = vst [vmem:[%s280 + $0x60] sm:$0xf] %v811
      %844 = vst [vmem:[%s280 + $0x64] sm:$0xf] %v812
      %845 = vst [vmem:[%s280 + $0x68] sm:$0xf] %v813
      %846 = vst [vmem:[%s280 + $0x6c] sm:$0xf] %v814
      %847 = vst [vmem:[%s280 + $0x70] sm:$0xf] %v815
      %848 = vst [vmem:[%s280 + $0x74] sm:$0xf] %v816
      %849 = vst [vmem:[%s280 + $0x78] sm:$0xf] %v817
      %850 = vst [vmem:[%s280 + $0x7c] sm:$0xf] %v818
      %s851 = smul.u32 32, %s28
      %p852 = scmp.lt.s32.totalorder %s27, 1
      %s853 = scalar_select %p852, %s27, 1
      %p854 = scmp.lt.s32.totalorder %s851, 287
      %s855 = scalar_select %p854, %s851, 287
      %s856 = smul.addr %s853, 288
      %s857 = sadd.s32 %s855, %s856
      %s858 = smul.addr %s857, 4
      %s859 = scalar_lea.vmem %s4, %s858
      // Predicated region
      $region33: #{complex_forward.4} parent=31 // pred_check
        %p860 = pneg %p139
      $region34: #{complex_forward.4} parent=31 // pred_check_branch
        %862 = sbr.rel (%p860) target = $region36
      $region35: #{complex_forward.4} parent=31 // pred_region
        %s863 = smul.u32 32, %s28
      $region36: #{complex_forward.4} parent=31 // pred_fallthru
        _
    $region32: #{complex_forward.4} parent=5 // pred_fallthru
      _
    %p864 = scmp.le.s32.totalorder 2, %s18
    // Predicated region
    $region37: #{complex_forward.4} parent=5 // pred_check
      %p865 = pneg %p864
    $region38: #{complex_forward.4} parent=5 // pred_check_branch
      %867 = sbr.rel (%p865) target = $region40
    $region39: #{complex_forward.4} parent=5 // pred_region
      %s868 = ssub.s32 %s18, 2
      // Predicated region
      $region41: #{complex_forward.4} parent=39 // pred_check
        %p869 = pneg %p145
      $region42: #{complex_forward.4} parent=39 // pred_check_branch
        %871 = sbr.rel (%p869) target = $region44
      $region43: #{complex_forward.4} parent=39 // pred_region
        %s872 = smul.u32 32, %s30
        %p873 = scmp.lt.s32.totalorder %s29, 1
        %s874 = scalar_select %p873, %s29, 1
        %p875 = scmp.lt.s32.totalorder %s872, 287
        %s876 = scalar_select %p875, %s872, 287
        %s877 = smul.addr %s874, 288
        %s878 = sadd.s32 %s876, %s877
        %s879 = smul.addr %s878, 4
        %s880 = scalar_lea.vmem %s4, %s879
      $region44: #{complex_forward.4} parent=39 // pred_fallthru
        _
    $region40: #{complex_forward.4} parent=5 // pred_fallthru
      _
  $region6: #{complex_forward.4} parent=0 // loop_footer
    %s22 = sadd.s32 1, %s18
  $region7: #{complex_forward.4} parent=0 // loop_footer_branch
    %17 = sbr.rel target = $region3
  $region8: #{complex_forward.4} parent=0 // loop_exit
    _

// kernel: complex_forward.5
$region0: #{complex_forward.5}
  #allocation0 [shape = 'u32[]', space=smem, size = 0x4, offset = 0x4, fixed_abs, tag = 'smem constant byte address 0x4 - core index']
  #allocation1 [shape = 'u32[72,128]{1,0:T(1,128)}', space=vmem, size = 0x9000, scoped, tag = 'internal scratch']
  #allocation2 [shape = 'f32[32,128]{1,0:T(8,128)}', space=vmem, size = 0x4000, scoped, tag = 'scratch operand']
  #allocation3 [shape = 's32[1]{0}', space=sflag, size = 0x4, scoped, tag = 'scoped memory for complex_forward.5']
  #allocation4 [shape = 'u8[512]{0}', space=smem, size = 0x200, scoped, tag = 'prefetched SMEM operand 0']
  %s0 = inlined_call_operand.vmem [shape: s32[9], index: 0, kind: input, shape index: {}]
  %s1 = inlined_call_operand.vmem [shape: bf16[2,32,128], index: 1, kind: input, shape index: {}]
  %s2 = inlined_call_operand.vmem [shape: bf16[2,2304,128], index: 2, kind: input, shape index: {}]
  %s3 = inlined_call_operand.vmem [shape: s8[32,2304], index: 3, kind: input, shape index: {}]
  %s4 = inlined_call_operand.vmem [shape: f32[32,1], index: 4, kind: input, shape index: {}]
  %s5 = inlined_call_operand.vmem [shape: bf16[128,128], index: 5, kind: input, shape index: {}]
  %s6 = inlined_call_operand.vmem [shape: f32[1,128], index: 6, kind: input, shape index: {}]
  %s7 = inlined_call_operand.vmem [shape: bf16[2,32,128], index: 7, kind: output, shape index: {}]
  %s8 = sld [smem:[#allocation0]]
  $region110: #{complex_forward.5} parent=0
    _
  %s10 = ssub.s32 1, %s8
  %s11 = scalar_select 0, %s10, %s8
  %s13 = sshll.u32 %s0, 4
  %s14 = int_to_ptr.vmem [resolvable:$true] %s13
  %16 = dma.vmem_to_smem %s14, 16, [#allocation4], [#allocation3]
  %18 = dma.done [#allocation3], 16
  %19 = sfence
  $region1: #{complex_forward.5} parent=0
    #allocation5 [shape = 'u8[16384]{0}', space=vmem, size = 0x4000, scoped, tag = 'input window, operand 3']
    loop: start=0, step=1, limit=20
    $region2: #{complex_forward.5} parent=1 // loop_pre_header
      _
    $region3: #{complex_forward.5} parent=1 // loop_header
      %s21 = sphi 0, %s25
      %p22 = scmp.ge.s32.totalorder %s21, 20
      %s28 = sphi 0, %s47
      %s29 = sphi 0, %s43
      %s30 = sphi 0, %s39
      %s31 = sphi 0, %s28
      %s32 = sphi 0, %s29
      %s33 = sphi 0, %s30
      %s34 = sphi 0, %s31
      %s35 = sphi 0, %s32
      %s36 = sphi 0, %s33
      %s52 = sphi 0, %s54
      %s55 = sphi 0, %s52
      %s56 = sphi 0, %s55
      %s72 = sphi 0, %s56
      %s80 = sphi 0, %s82
      %s83 = sphi 0, %s80
      %s84 = sphi 0, %s83
      %s100 = sphi 0, %s84
      %s108 = sphi 0, %s110
      %s111 = sphi 0, %s108
      %s112 = sphi 0, %s111
      %s128 = sphi 0, %s112
      %s134 = sphi 0, %s136
      %s137 = sphi 0, %s134
      %s138 = sphi 0, %s137
      %s154 = sphi 0, %s138
      %s158 = sphi 0, %s158
      %s160 = sphi 0, %s158
      %s161 = sphi 0, %s160
      %s175 = sphi 0, %s161
      %s179 = sphi 0, %s179
      %s181 = sphi 0, %s179
      %s182 = sphi 0, %s181
      %s196 = sphi 0, %s182
      %s204 = sphi 0, %s206
      %s207 = sphi 0, %s204
      %s208 = sphi 0, %s207
      %s224 = sphi 0, %s208
    $region4: #{complex_forward.5} parent=1 // loop_header_branch
      %24 = sbr.rel (%p22) target = $region8
    $region5: #{complex_forward.5} parent=1 // loop_body
      %s26 = ssub.s32 %s21, 1
      %s27 = ssub.s32 %s21, 2
      %s37 = sadd.s32 1, %s30
      %p38 = scmp.ge.s32.totalorder %s37, 9
      %s39 = scalar_select %p38, 0, %s37
      %s40 = sadd.s32 1, %s29
      %s41 = scalar_select %p38, %s40, %s29
      %p42 = scmp.ge.s32.totalorder %s41, 1
      %s43 = scalar_select %p42, 0, %s41
      %s44 = sadd.s32 1, %s28
      %s45 = scalar_select %p42, %s44, %s28
      %p46 = scmp.ge.s32.totalorder %s45, 2
      %s47 = scalar_select %p46, 0, %s45
      %s48 = ssub.s32 %s28, %s47
      %s49 = ssub.s32 %s29, %s43
      %s50 = sor.u32 %s48, %s49
      %p51 = scmp.eq.s32.totalorder %s50, 0
      %s53 = sadd.s32 %s52, 1
      %s54 = scalar_select %p51, %s52, %s53
      %p57 = pneg %p51
      %p58 = scmp.eq.s32.totalorder %s21, 17
      %p59 = por %p57, %p58
      %p60 = scmp.ne.s32.totalorder %s52, %s55
      %p61 = scmp.eq.s32.totalorder %s21, 0
      %p62 = por %p60, %p61
      %p63 = scmp.ne.s32.totalorder %s52, %s55
      %p64 = scmp.eq.s32.totalorder %s26, 17
      %p65 = por %p63, %p64
      %p66 = scmp.ne.s32.totalorder %s55, %s56
      %p67 = scmp.eq.s32.totalorder %s26, 0
      %p68 = por %p66, %p67
      %p69 = scmp.ne.s32.totalorder %s55, %s56
      %p70 = scmp.eq.s32.totalorder %s27, 17
      %p71 = por %p69, %p70
      %p73 = scmp.ne.s32.totalorder %s56, %s72
      %p74 = scmp.eq.s32.totalorder %s27, 0
      %p75 = por %p73, %p74
      %s76 = ssub.s32 %s28, %s47
      %s77 = ssub.s32 %s30, %s39
      %s78 = sor.u32 %s76, %s77
      %p79 = scmp.eq.s32.totalorder %s78, 0
      %s81 = sadd.s32 %s80, 1
      %s82 = scalar_select %p79, %s80, %s81
      %p85 = pneg %p79
      %p86 = scmp.eq.s32.totalorder %s21, 17
      %p87 = por %p85, %p86
      %p88 = scmp.ne.s32.totalorder %s80, %s83
      %p89 = scmp.eq.s32.totalorder %s21, 0
      %p90 = por %p88, %p89
      %p91 = scmp.ne.s32.totalorder %s80, %s83
      %p92 = scmp.eq.s32.totalorder %s26, 17
      %p93 = por %p91, %p92
      %p94 = scmp.ne.s32.totalorder %s83, %s84
      %p95 = scmp.eq.s32.totalorder %s26, 0
      %p96 = por %p94, %p95
      %p97 = scmp.ne.s32.totalorder %s83, %s84
      %p98 = scmp.eq.s32.totalorder %s27, 17
      %p99 = por %p97, %p98
      %p101 = scmp.ne.s32.totalorder %s84, %s100
      %p102 = scmp.eq.s32.totalorder %s27, 0
      %p103 = por %p101, %p102
      %s104 = ssub.s32 %s29, %s43
      %s105 = ssub.s32 %s30, %s39
      %s106 = sor.u32 %s104, %s105
      %p107 = scmp.eq.s32.totalorder %s106, 0
      %s109 = sadd.s32 %s108, 1
      %s110 = scalar_select %p107, %s108, %s109
      %p113 = pneg %p107
      %p114 = scmp.eq.s32.totalorder %s21, 17
      %p115 = por %p113, %p114
      %p116 = scmp.ne.s32.totalorder %s108, %s111
      %p117 = scmp.eq.s32.totalorder %s21, 0
      %p118 = por %p116, %p117
      %p119 = scmp.ne.s32.totalorder %s108, %s111
      %p120 = scmp.eq.s32.totalorder %s26, 17
      %p121 = por %p119, %p120
      %p122 = scmp.ne.s32.totalorder %s111, %s112
      %p123 = scmp.eq.s32.totalorder %s26, 0
      %p124 = por %p122, %p123
      %p125 = scmp.ne.s32.totalorder %s111, %s112
      %p126 = scmp.eq.s32.totalorder %s27, 17
      %p127 = por %p125, %p126
      %p129 = scmp.ne.s32.totalorder %s112, %s128
      %p130 = scmp.eq.s32.totalorder %s27, 0
      %p131 = por %p129, %p130
      %s132 = ssub.s32 %s29, %s43
      %p133 = scmp.eq.s32.totalorder %s132, 0
      %s135 = sadd.s32 %s134, 1
      %s136 = scalar_select %p133, %s134, %s135
      %p139 = pneg %p133
      %p140 = scmp.eq.s32.totalorder %s21, 17
      %p141 = por %p139, %p140
      %p142 = scmp.ne.s32.totalorder %s134, %s137
      %p143 = scmp.eq.s32.totalorder %s21, 0
      %p144 = por %p142, %p143
      %p145 = scmp.ne.s32.totalorder %s134, %s137
      %p146 = scmp.eq.s32.totalorder %s26, 17
      %p147 = por %p145, %p146
      %p148 = scmp.ne.s32.totalorder %s137, %s138
      %p149 = scmp.eq.s32.totalorder %s26, 0
      %p150 = por %p148, %p149
      %p151 = scmp.ne.s32.totalorder %s137, %s138
      %p152 = scmp.eq.s32.totalorder %s27, 17
      %p153 = por %p151, %p152
      %p155 = scmp.ne.s32.totalorder %s138, %s154
      %p156 = scmp.eq.s32.totalorder %s27, 0
      %p157 = por %p155, %p156
      %s159 = sadd.s32 %s158, 1
      %p162 = scmp.eq.s32.totalorder %s21, 17
      %p163 = scmp.ne.s32.totalorder %s158, %s160
      %p164 = scmp.eq.s32.totalorder %s21, 0
      %p165 = por %p163, %p164
      %p166 = scmp.ne.s32.totalorder %s158, %s160
      %p167 = scmp.eq.s32.totalorder %s26, 17
      %p168 = por %p166, %p167
      %p169 = scmp.ne.s32.totalorder %s160, %s161
      %p170 = scmp.eq.s32.totalorder %s26, 0
      %p171 = por %p169, %p170
      %p172 = scmp.ne.s32.totalorder %s160, %s161
      %p173 = scmp.eq.s32.totalorder %s27, 17
      %p174 = por %p172, %p173
      %p176 = scmp.ne.s32.totalorder %s161, %s175
      %p177 = scmp.eq.s32.totalorder %s27, 0
      %p178 = por %p176, %p177
      %s180 = sadd.s32 %s179, 1
      %p183 = scmp.eq.s32.totalorder %s21, 17
      %p184 = scmp.ne.s32.totalorder %s179, %s181
      %p185 = scmp.eq.s32.totalorder %s21, 0
      %p186 = por %p184, %p185
      %p187 = scmp.ne.s32.totalorder %s179, %s181
      %p188 = scmp.eq.s32.totalorder %s26, 17
      %p189 = por %p187, %p188
      %p190 = scmp.ne.s32.totalorder %s181, %s182
      %p191 = scmp.eq.s32.totalorder %s26, 0
      %p192 = por %p190, %p191
      %p193 = scmp.ne.s32.totalorder %s181, %s182
      %p194 = scmp.eq.s32.totalorder %s27, 17
      %p195 = por %p193, %p194
      %p197 = scmp.ne.s32.totalorder %s182, %s196
      %p198 = scmp.eq.s32.totalorder %s27, 0
      %p199 = por %p197, %p198
      %s200 = ssub.s32 %s28, %s47
      %s201 = ssub.s32 %s29, %s43
      %s202 = sor.u32 %s200, %s201
      %p203 = scmp.eq.s32.totalorder %s202, 0
      %s205 = sadd.s32 %s204, 1
      %s206 = scalar_select %p203, %s204, %s205
      %p209 = pneg %p203
      %p210 = scmp.eq.s32.totalorder %s21, 17
      %p211 = por %p209, %p210
      %p212 = scmp.ne.s32.totalorder %s204, %s207
      %p213 = scmp.eq.s32.totalorder %s21, 0
      %p214 = por %p212, %p213
      %p215 = scmp.ne.s32.totalorder %s204, %s207
      %p216 = scmp.eq.s32.totalorder %s26, 17
      %p217 = por %p215, %p216
      %p218 = scmp.ne.s32.totalorder %s207, %s208
      %p219 = scmp.eq.s32.totalorder %s26, 0
      %p220 = por %p218, %p219
      %p221 = scmp.ne.s32.totalorder %s207, %s208
      %p222 = scmp.eq.s32.totalorder %s27, 17
      %p223 = por %p221, %p222
      %p225 = scmp.ne.s32.totalorder %s208, %s224
      %p226 = scmp.eq.s32.totalorder %s27, 0
      %p227 = por %p225, %p226
      %p228 = scmp.le.s32.totalorder 1, %s21
      %p229 = scmp.lt.s32.totalorder %s21, 19
      %p230 = pnand %p228, %p229
      %p231 = pneg %p230
      // Predicated region
      $region9: #{complex_forward.5} parent=5 // pred_check
        _
      $region10: #{complex_forward.5} parent=5 // pred_check_branch
        %233 = sbr.rel (%p230) target = $region12
      $region11: #{complex_forward.5} parent=5 // pred_region
        %s234 = ssub.s32 %s21, 1
        // Predicated region
        $region13: #{complex_forward.5} parent=11 // pred_check
          %p235 = pneg %p150
        $region14: #{complex_forward.5} parent=11 // pred_check_branch
          %237 = sbr.rel (%p235) target = $region16
        $region15: #{complex_forward.5} parent=11 // pred_region
          %s238 = smul.u32 4, %s32
          %p239 = scmp.lt.s32.totalorder %s238, 3
          %s240 = scalar_select %p239, %s238, 3
          %s241 = smul.addr %s240, 8
          %s242 = scalar_lea.vmem %s4, %s241
          %s243 = smul.u32 4, %s32
        $region16: #{complex_forward.5} parent=11 // pred_fallthru
          _
        // Predicated region
        $region17: #{complex_forward.5} parent=11 // pred_check
          %p244 = pneg %p171
        $region18: #{complex_forward.5} parent=11 // pred_check_branch
          %246 = sbr.rel (%p244) target = $region20
        $region19: #{complex_forward.5} parent=11 // pred_region
          _
        $region20: #{complex_forward.5} parent=11 // pred_fallthru
          _
        // Predicated region
        $region21: #{complex_forward.5} parent=11 // pred_check
          %p247 = pneg %p192
        $region22: #{complex_forward.5} parent=11 // pred_check_branch
          %249 = sbr.rel (%p247) target = $region24
        $region23: #{complex_forward.5} parent=11 // pred_region
          _
        $region24: #{complex_forward.5} parent=11 // pred_fallthru
          _
      $region12: #{complex_forward.5} parent=5 // pred_fallthru
        _
      %p250 = scmp.lt.s32.totalorder %s21, 18
      // Predicated region
      $region25: #{complex_forward.5} parent=5 // pred_check
        %p251 = pneg %p250
      $region26: #{complex_forward.5} parent=5 // pred_check_branch
        %253 = sbr.rel (%p251) target = $region28
      $region27: #{complex_forward.5} parent=5 // pred_region
        // Predicated region
        $region29: #{complex_forward.5} parent=27 // pred_check
          %p254 = pneg %p62
        $region30: #{complex_forward.5} parent=27 // pred_check_branch
          %256 = sbr.rel (%p254) target = $region32
        $region31: #{complex_forward.5} parent=27 // pred_region
          %s257 = smul.u32 4, %s29
          %p258 = scmp.lt.s32.totalorder %s28, 1
          %s259 = scalar_select %p258, %s28, 1
          %p260 = scmp.lt.s32.totalorder %s257, 3
          %s261 = scalar_select %p260, %s257, 3
          %s262 = smul.addr %s259, 4
          %s263 = sadd.s32 %s261, %s262
          %s264 = smul.addr %s263, 4
          %s265 = scalar_lea.vmem %s1, %s264
          %s266 = smul.u32 4, %s29
        $region32: #{complex_forward.5} parent=27 // pred_fallthru
          _
        // Predicated region
        $region33: #{complex_forward.5} parent=27 // pred_check
          %p267 = pneg %p90
        $region34: #{complex_forward.5} parent=27 // pred_check_branch
          %269 = sbr.rel (%p267) target = $region36
        $region35: #{complex_forward.5} parent=27 // pred_region
          %s270 = smul.u32 32, %s30
          %p271 = scmp.lt.s32.totalorder %s28, 1
          %s272 = scalar_select %p271, %s28, 1
          %p273 = scmp.lt.s32.totalorder %s270, 287
          %s274 = scalar_select %p273, %s270, 287
          %s275 = smul.addr %s272, 288
          %s276 = sadd.s32 %s274, %s275
          %s277 = smul.addr %s276, 4
          %s278 = scalar_lea.vmem %s2, %s277
          %s279 = smul.u32 32, %s30
        $region36: #{complex_forward.5} parent=27 // pred_fallthru
          _
        // Predicated region
        $region37: #{complex_forward.5} parent=27 // pred_check
          %p280 = pneg %p118
        $region38: #{complex_forward.5} parent=27 // pred_check_branch
          %282 = sbr.rel (%p280) target = $region40
        $region39: #{complex_forward.5} parent=27 // pred_region
          %s283 = sand.u32 %s108, 1
          %s284 = sand.u32 %s108, 1
          %s285 = smul.addr %s284, 16
          %s286 = scalar_lea.vmem [#allocation5], %s285
          %s287 = smul.u32 4, %s29
          %s288 = smul.u32 2, %s30
          %s289 = smul.addr %s287, 18
          %s290 = sadd.s32 %s288, %s289
          %s291 = smul.addr %s290, 2
          %s292 = scalar_lea.vmem %s3, %s291
          // Predicated region
          $region41: #{complex_forward.5} parent=39 // pred_check
            _
          $region42: #{complex_forward.5} parent=39 // pred_check_branch
            %294 = sbr.rel (0) target = $region44
          $region43: #{complex_forward.5} parent=39 // pred_region
            // Predicated region
            $region45: #{complex_forward.5} parent=43 // pred_check
              _
            $region46: #{complex_forward.5} parent=43 // pred_check_branch
              %296 = sbr.rel target = $region48
            $region47: #{complex_forward.5} parent=43 // pred_region
              // Predicated region
              $region60: #{complex_forward.5} parent=47 // pred_check
                _
              $region61: #{complex_forward.5} parent=47 // pred_check_branch
                %318 = sbr.rel (0) target = $region63
              $region62: #{complex_forward.5} parent=47 // pred_region
                loop: start=0, step=1, limit=1
                $region64: #{complex_forward.5} parent=62 // loop_pre_header
                  _
                $region65: #{complex_forward.5} parent=62 // loop_header
                  %s320 = sphi 0, %s324
                  %p321 = scmp.ge.s32.totalorder %s320, 1
                  %s325 = sphi %s292, %s292
                  %s326 = sphi %s286, %s286
                $region66: #{complex_forward.5} parent=62 // loop_header_branch
                  %323 = sbr.rel (%p321) target = $region70
                $region67: #{complex_forward.5} parent=62 // loop_body
                  _
                $region68: #{complex_forward.5} parent=62 // loop_footer
                  %s324 = sadd.s32 1, %s320
                $region69: #{complex_forward.5} parent=62 // loop_footer_branch
                  %319 = sbr.rel target = $region65
                $region70: #{complex_forward.5} parent=62 // loop_exit
                  _
                %s328 = ssub.s32 16, 1
                loop: start=0, step=1, limit=1
                $region71: #{complex_forward.5} parent=62 // loop_pre_header
                  _
                $region72: #{complex_forward.5} parent=62 // loop_header
                  %s330 = sphi 0, %s334
                  %p331 = scmp.ge.s32.totalorder %s330, 1
                  %s335 = sphi %s292, %s292
                  %s336 = sphi %s286, %s286
                $region73: #{complex_forward.5} parent=62 // loop_header_branch
                  %333 = sbr.rel (%p331) target = $region77
                $region74: #{complex_forward.5} parent=62 // loop_body
                  %v337 = vld [vmem:[%s335] sm:%s328]
                  %338 = vst [vmem:[%s336] sm:%s328] %v337
                  %v339 = vld [vmem:[%s335 + $0x24] sm:%s328]
                  %340 = vst [vmem:[%s336 + $0x4] sm:%s328] %v339
                  %v341 = vld [vmem:[%s335 + $0x48] sm:%s328]
                  %342 = vst [vmem:[%s336 + $0x8] sm:%s328] %v341
                  %v343 = vld [vmem:[%s335 + $0x6c] sm:%s328]
                  %344 = vst [vmem:[%s336 + $0xc] sm:%s328] %v343
                $region75: #{complex_forward.5} parent=62 // loop_footer
                  %s334 = sadd.s32 1, %s330
                $region76: #{complex_forward.5} parent=62 // loop_footer_branch
                  %329 = sbr.rel target = $region72
                $region77: #{complex_forward.5} parent=62 // loop_exit
                  _
              $region63: #{complex_forward.5} parent=47 // pred_fallthru
                _
            $region48: #{complex_forward.5} parent=43 // pred_fallthru
              _
            // Predicated region
            $region49: #{complex_forward.5} parent=43 // pred_check
              _
            $region50: #{complex_forward.5} parent=43 // pred_check_branch
              %298 = sbr.rel (0) target = $region52
            $region51: #{complex_forward.5} parent=43 // pred_region
              %s300 = ssub.s32 16, 1
              loop: start=0, step=1, limit=1
              $region53: #{complex_forward.5} parent=51 // loop_pre_header
                _
              $region54: #{complex_forward.5} parent=51 // loop_header
                %s302 = sphi 0, %s306
                %p303 = scmp.ge.s32.totalorder %s302, 1
                %s307 = sphi %s292, %s292
                %s308 = sphi %s286, %s286
              $region55: #{complex_forward.5} parent=51 // loop_header_branch
                %305 = sbr.rel (%p303) target = $region59
              $region56: #{complex_forward.5} parent=51 // loop_body
                %v309 = vld [vmem:[%s307] sm:%s300]
                %310 = vst [vmem:[%s308] sm:%s300] %v309
                %v311 = vld [vmem:[%s307 + $0x24] sm:%s300]
                %312 = vst [vmem:[%s308 + $0x4] sm:%s300] %v311
                %v313 = vld [vmem:[%s307 + $0x48] sm:%s300]
                %314 = vst [vmem:[%s308 + $0x8] sm:%s300] %v313
                %v315 = vld [vmem:[%s307 + $0x6c] sm:%s300]
                %316 = vst [vmem:[%s308 + $0xc] sm:%s300] %v315
              $region57: #{complex_forward.5} parent=51 // loop_footer
                %s306 = sadd.s32 1, %s302
              $region58: #{complex_forward.5} parent=51 // loop_footer_branch
                %301 = sbr.rel target = $region54
              $region59: #{complex_forward.5} parent=51 // loop_exit
                _
            $region52: #{complex_forward.5} parent=43 // pred_fallthru
              _
          $region44: #{complex_forward.5} parent=39 // pred_fallthru
            _
          %345 = vnop
        $region40: #{complex_forward.5} parent=27 // pred_fallthru
          _
      $region28: #{complex_forward.5} parent=5 // pred_fallthru
        _
      %p346 = scmp.le.s32.totalorder 1, %s21
      %p347 = scmp.lt.s32.totalorder %s21, 19
      %p348 = pnand %p346, %p347
      %p349 = pneg %p348
      // Predicated region
      $region78: #{complex_forward.5} parent=5 // pred_check
        _
      $region79: #{complex_forward.5} parent=5 // pred_check_branch
        %351 = sbr.rel (%p348) target = $region81
      $region80: #{complex_forward.5} parent=5 // pred_region
        %s352 = ssub.s32 %s21, 1
        %s353 = sand.u32 %s111, 1
        %s354 = sand.u32 %s111, 1
        %s355 = smul.addr %s354, 16
        %s356 = scalar_lea.vmem [#allocation5], %s355
        // Predicated region
        $region82: #{complex_forward.5} parent=80 // pred_check
          %p357 = pneg %p124
        $region83: #{complex_forward.5} parent=80 // pred_check_branch
          %359 = sbr.rel (%p357) target = $region85
        $region84: #{complex_forward.5} parent=80 // pred_region
          _
        $region85: #{complex_forward.5} parent=80 // pred_fallthru
          _
        %s360 = smul.u32 4, %s32
        %p361 = scmp.lt.s32.totalorder %s31, 1
        %s362 = scalar_select %p361, %s31, 1
        %p363 = scmp.lt.s32.totalorder %s360, 3
        %s364 = scalar_select %p363, %s360, 3
        %s365 = smul.addr %s362, 4
        %s366 = sadd.s32 %s364, %s365
        %s367 = smul.addr %s366, 4
        %s368 = scalar_lea.vmem %s1, %s367
        %p369 = pneg %p68
        %p370 = pneg %p65
        %s371 = smul.u32 32, %s33
        %p372 = scmp.lt.s32.totalorder %s31, 1
        %s373 = scalar_select %p372, %s31, 1
        %p374 = scmp.lt.s32.totalorder %s371, 287
        %s375 = scalar_select %p374, %s371, 287
        %s376 = smul.addr %s373, 288
        %s377 = sadd.s32 %s375, %s376
        %s378 = smul.addr %s377, 4
        %s379 = scalar_lea.vmem %s2, %s378
        %p380 = pneg %p96
        %p381 = pneg %p93
        %s382 = sand.u32 %s111, 1
        %s383 = sand.u32 %s111, 1
        %s384 = smul.addr %s383, 16
        %s385 = scalar_lea.vmem [#allocation5], %s384
        %p386 = pneg %p124
        %p387 = pneg %p121
        %s388 = smul.u32 4, %s32
        %p389 = scmp.lt.s32.totalorder %s388, 3
        %s390 = scalar_select %p389, %s388, 3
        %s391 = smul.addr %s390, 8
        %s392 = scalar_lea.vmem %s4, %s391
        %p393 = pneg %p150
        %p394 = pneg %p147
        %p395 = pneg %p171
        %p396 = pneg %p168
        %p397 = pneg %p192
        %p398 = pneg %p189
        %p399 = pneg %p220
        %p400 = pneg %p217
        %s401 = smul.u32 4, %s32
        %p402 = scmp.lt.s32.totalorder %s31, 1
        %s403 = scalar_select %p402, %s31, 1
        %p404 = scmp.lt.s32.totalorder %s401, 3
        %s405 = scalar_select %p404, %s401, 3
        %s406 = smul.addr %s403, 4
        %s407 = sadd.s32 %s405, %s406
        %s408 = smul.addr %s407, 4
        %s409 = scalar_lea.vmem %s7, %s408
        %s410 = smul.u32 4, %s32
        %p411 = scmp.lt.s32.totalorder %s31, 1
        %s412 = scalar_select %p411, %s31, 1
        %p413 = scmp.lt.s32.totalorder %s410, 3
        %s414 = scalar_select %p413, %s410, 3
        %s415 = smul.addr %s412, 4
        %s416 = sadd.s32 %s414, %s415
        %s417 = smul.addr %s416, 4
        %s418 = scalar_lea.vmem %s1, %s417
        %s419 = smul.u32 4, %s32
        %s420 = smul.u32 32, %s33
        %p421 = scmp.lt.s32.totalorder %s31, 1
        %s422 = scalar_select %p421, %s31, 1
        %p423 = scmp.lt.s32.totalorder %s420, 287
        %s424 = scalar_select %p423, %s420, 287
        %s425 = smul.addr %s422, 288
        %s426 = sadd.s32 %s424, %s425
        %s427 = smul.addr %s426, 4
        %s428 = scalar_lea.vmem %s2, %s427
        %s429 = smul.u32 32, %s33
        %s430 = smul.u32 4, %s32
        %s431 = smul.u32 2, %s33
        %s432 = smul.u32 4, %s32
        %p433 = scmp.lt.s32.totalorder %s432, 3
        %s434 = scalar_select %p433, %s432, 3
        %s435 = smul.addr %s434, 8
        %s436 = scalar_lea.vmem %s4, %s435
        %s437 = smul.u32 4, %s32
        %s438 = smul.u32 4, %s32
        %p439 = scmp.lt.s32.totalorder %s31, 1
        %s440 = scalar_select %p439, %s31, 1
        %p441 = scmp.lt.s32.totalorder %s438, 3
        %s442 = scalar_select %p441, %s438, 3
        %s443 = smul.addr %s440, 4
        %s444 = sadd.s32 %s442, %s443
        %s445 = smul.addr %s444, 4
        %s446 = scalar_lea.vmem %s7, %s445
        %s447 = smul.u32 4, %s32
        %p448 = scmp.eq.s32.totalorder %s33, 0
        // Predicated region
        $region86: #{complex_forward.5} parent=80 // pred_check
          %p449 = pneg %p448
        $region87: #{complex_forward.5} parent=80 // pred_check_branch
          %451 = sbr.rel (%p449) target = $region89
        $region88: #{complex_forward.5} parent=80 // pred_region
          %452 = vst [vmem:[#allocation2] sm:$0xff] 0.0
          %453 = vst [vmem:[#allocation2 + $0x8] sm:$0xff] 0.0
          %454 = vst [vmem:[#allocation2 + $0x10] sm:$0xff] 0.0
          %455 = vst [vmem:[#allocation2 + $0x18] sm:$0xff] 0.0
        $region89: #{complex_forward.5} parent=80 // pred_fallthru
          _
        %s456 = sld [smem:[#allocation4 + %s33]]
        %p457 = scmp.ne.s32.totalorder %s456, 0
        // Predicated region
        $region90: #{complex_forward.5} parent=80 // pred_check
          %p458 = pneg %p457
        $region91: #{complex_forward.5} parent=80 // pred_check_branch
          %460 = sbr.rel (%p458) target = $region93
        $region92: #{complex_forward.5} parent=80 // pred_region
          %v461 = vld [vmem:[#allocation2] sm:$0xff]
          %v462 = vld [vmem:[#allocation2 + $0x8] sm:$0xff]
          %v463 = vld [vmem:[#allocation2 + $0x10] sm:$0xff]
          %v464 = vld [vmem:[#allocation2 + $0x18] sm:$0xff]
          %v465 = vld [vmem:[%s356] sm:$0xf]
          %v466 = vld [vmem:[%s356 + $0x4] sm:$0xf]
          %v467 = vld [vmem:[%s356 + $0x8] sm:$0xf]
          %v468 = vld [vmem:[%s356 + $0xc] sm:$0xf]
          %v469 = vunpack.c.0.s8 %v465
          %v470 = vunpack.c.1.s8 %v465
          %v471 = vunpack.c.0.s8 %v466
          %v472 = vunpack.c.1.s8 %v466
          %v473 = vunpack.c.0.s8 %v467
          %v474 = vunpack.c.1.s8 %v467
          %v475 = vunpack.c.0.s8 %v468
          %v476 = vunpack.c.1.s8 %v468
          %v477 = vcvt.s32.f32 %v469
          %v478 = vcvt.s32.f32 %v470
          %v479 = vcvt.s32.f32 %v471
          %v480 = vcvt.s32.f32 %v472
          %v481 = vcvt.s32.f32 %v473
          %v482 = vcvt.s32.f32 %v474
          %v483 = vcvt.s32.f32 %v475
          %v484 = vcvt.s32.f32 %v476
          %v485 = vpack.c.bf16 %v479, %v477
          %v486 = vpack.c.bf16 %v480, %v478
          %v487 = vpack.c.bf16 %v483, %v481
          %v488 = vpack.c.bf16 %v484, %v482
          %v489 = vld [vmem:[%s428] sm:$0xf]
          %v490 = vld [vmem:[%s428 + $0x4] sm:$0xf]
          %v491 = vld [vmem:[%s428 + $0x8] sm:$0xf]
          %v492 = vld [vmem:[%s428 + $0xc] sm:$0xf]
          %v493 = vld [vmem:[%s428 + $0x10] sm:$0xf]
          %v494 = vld [vmem:[%s428 + $0x14] sm:$0xf]
          %v495 = vld [vmem:[%s428 + $0x18] sm:$0xf]
          %v496 = vld [vmem:[%s428 + $0x1c] sm:$0xf]
          %v497 = vld [vmem:[%s428 + $0x20] sm:$0xf]
          %v498 = vld [vmem:[%s428 + $0x24] sm:$0xf]
          %v499 = vld [vmem:[%s428 + $0x28] sm:$0xf]
          %v500 = vld [vmem:[%s428 + $0x2c] sm:$0xf]
          %v501 = vld [vmem:[%s428 + $0x30] sm:$0xf]
          %v502 = vld [vmem:[%s428 + $0x34] sm:$0xf]
          %v503 = vld [vmem:[%s428 + $0x38] sm:$0xf]
          %v504 = vld [vmem:[%s428 + $0x3c] sm:$0xf]
          %v505 = vld [vmem:[%s428 + $0x40] sm:$0xf]
          %v506 = vld [vmem:[%s428 + $0x44] sm:$0xf]
          %v507 = vld [vmem:[%s428 + $0x48] sm:$0xf]
          %v508 = vld [vmem:[%s428 + $0x4c] sm:$0xf]
          %v509 = vld [vmem:[%s428 + $0x50] sm:$0xf]
          %v510 = vld [vmem:[%s428 + $0x54] sm:$0xf]
          %v511 = vld [vmem:[%s428 + $0x58] sm:$0xf]
          %v512 = vld [vmem:[%s428 + $0x5c] sm:$0xf]
          %v513 = vld [vmem:[%s428 + $0x60] sm:$0xf]
          %v514 = vld [vmem:[%s428 + $0x64] sm:$0xf]
          %v515 = vld [vmem:[%s428 + $0x68] sm:$0xf]
          %v516 = vld [vmem:[%s428 + $0x6c] sm:$0xf]
          %v517 = vld [vmem:[%s428 + $0x70] sm:$0xf]
          %v518 = vld [vmem:[%s428 + $0x74] sm:$0xf]
          %v519 = vld [vmem:[%s428 + $0x78] sm:$0xf]
          %v520 = vld [vmem:[%s428 + $0x7c] sm:$0xf]
          %v553 = vunpack.c.l.b16 %v489
          %v554 = vunpack.c.l.b16 %v490
          %v555 = vunpack.c.l.b16 %v491
          %v556 = vunpack.c.l.b16 %v492
          %v557 = vunpack.c.l.b16 %v493
          %v558 = vunpack.c.l.b16 %v494
          %v559 = vunpack.c.l.b16 %v495
          %v560 = vunpack.c.l.b16 %v496
          %v561 = vunpack.c.l.b16 %v497
          %v562 = vunpack.c.l.b16 %v498
          %v563 = vunpack.c.l.b16 %v499
          %v564 = vunpack.c.l.b16 %v500
          %v565 = vunpack.c.l.b16 %v501
          %v566 = vunpack.c.l.b16 %v502
          %v567 = vunpack.c.l.b16 %v503
          %v568 = vunpack.c.l.b16 %v504
          %v569 = vunpack.c.l.b16 %v505
          %v570 = vunpack.c.l.b16 %v506
          %v571 = vunpack.c.l.b16 %v507
          %v572 = vunpack.c.l.b16 %v508
          %v573 = vunpack.c.l.b16 %v509
          %v574 = vunpack.c.l.b16 %v510
          %v575 = vunpack.c.l.b16 %v511
          %v576 = vunpack.c.l.b16 %v512
          %v577 = vunpack.c.l.b16 %v513
          %v578 = vunpack.c.l.b16 %v514
          %v579 = vunpack.c.l.b16 %v515
          %v580 = vunpack.c.l.b16 %v516
          %v581 = vunpack.c.l.b16 %v517
          %v582 = vunpack.c.l.b16 %v518
          %v583 = vunpack.c.l.b16 %v519
          %v584 = vunpack.c.l.b16 %v520
          %v585 = vpack.c.b16 %v554, %v553
          %v586 = vpack.c.b16 %v556, %v555
          %v587 = vpack.c.b16 %v558, %v557
          %v588 = vpack.c.b16 %v560, %v559
          %v589 = vpack.c.b16 %v562, %v561
          %v590 = vpack.c.b16 %v564, %v563
          %v591 = vpack.c.b16 %v566, %v565
          %v592 = vpack.c.b16 %v568, %v567
          %v593 = vpack.c.b16 %v570, %v569
          %v594 = vpack.c.b16 %v572, %v571
          %v595 = vpack.c.b16 %v574, %v573
          %v596 = vpack.c.b16 %v576, %v575
          %v597 = vpack.c.b16 %v578, %v577
          %v598 = vpack.c.b16 %v580, %v579
          %v599 = vpack.c.b16 %v582, %v581
          %v600 = vpack.c.b16 %v584, %v583
          %617 = vmatpush.bf16.msra.mxu0 %v592
          %618 = vmatpush.bf16.msra.mxu0 %v591
          %619 = vmatpush.bf16.msra.mxu0 %v590
          %620 = vmatpush.bf16.msra.mxu0 %v589
          %621 = vmatpush.bf16.msra.mxu0 %v588
          %622 = vmatpush.bf16.msra.mxu0 %v587
          %623 = vmatpush.bf16.msra.mxu0 %v586
          %624 = vmatpush.bf16.msra.mxu0 %v585
          %625 = vmatmul.bf16.gmra.mxu0 %v485
          %v626 = vpop.f32.mrf.mxu0
          %v627 = vadd.f32 0.0, %v626
          %v628 = vpop.f32.mrf.mxu0
          %v629 = vadd.f32 0.0, %v628
          %630 = vmatmul.bf16.gmra.mxu0 %v487
          %v631 = vpop.f32.mrf.mxu0
          %v632 = vadd.f32 0.0, %v631
          %v633 = vpop.f32.mrf.mxu0
          %v634 = vadd.f32 0.0, %v633
          %635 = vdwg.mxu0
          %636 = vmatpush.bf16.msra.mxu0 %v600
          %637 = vmatpush.bf16.msra.mxu0 %v599
          %638 = vmatpush.bf16.msra.mxu0 %v598
          %639 = vmatpush.bf16.msra.mxu0 %v597
          %640 = vmatpush.bf16.msra.mxu0 %v596
          %641 = vmatpush.bf16.msra.mxu0 %v595
          %642 = vmatpush.bf16.msra.mxu0 %v594
          %643 = vmatpush.bf16.msra.mxu0 %v593
          %644 = vmatmul.bf16.gmra.mxu0 %v486
          %v645 = vpop.f32.mrf.mxu0
          %v646 = vadd.f32 %v627, %v645
          %v647 = vpop.f32.mrf.mxu0
          %v648 = vadd.f32 %v629, %v647
          %649 = vmatmul.bf16.gmra.mxu0 %v488
          %v650 = vpop.f32.mrf.mxu0
          %v651 = vadd.f32 %v632, %v650
          %v652 = vpop.f32.mrf.mxu0
          %v653 = vadd.f32 %v634, %v652
          %654 = vdwg.mxu0
          %v655 = vadd.f32 %v461, %v646
          %v656 = vadd.f32 %v462, %v648
          %v657 = vadd.f32 %v463, %v651
          %v658 = vadd.f32 %v464, %v653
          %659 = vst [vmem:[#allocation2] sm:$0xff] %v655
          %660 = vst [vmem:[#allocation2 + $0x8] sm:$0xff] %v656
          %661 = vst [vmem:[#allocation2 + $0x10] sm:$0xff] %v657
          %662 = vst [vmem:[#allocation2 + $0x18] sm:$0xff] %v658
        $region93: #{complex_forward.5} parent=80 // pred_fallthru
          _
        %p663 = scmp.eq.s32.totalorder %s33, 8
        // Predicated region
        $region94: #{complex_forward.5} parent=80 // pred_check
          %p664 = pneg %p663
        $region95: #{complex_forward.5} parent=80 // pred_check_branch
          %666 = sbr.rel (%p664) target = $region97
        $region96: #{complex_forward.5} parent=80 // pred_region
          %v667 = vld [vmem:[#allocation2] sm:$0xff]
          %v668 = vld [vmem:[#allocation2 + $0x8] sm:$0xff]
          %v669 = vld [vmem:[#allocation2 + $0x10] sm:$0xff]
          %v670 = vld [vmem:[#allocation2 + $0x18] sm:$0xff]
          %v671 = vld [vmem:[%s436] sm:$0xff]
          %v672 = vld [vmem:[%s436 + $0x8] sm:$0xff]
          %v673 = vld [vmem:[%s436 + $0x10] sm:$0xff]
          %v674 = vld [vmem:[%s436 + $0x18] sm:$0xff]
          %676 = vset.pattern.permute.xlu0 0
          %677 = vperm.xlu0 %676, %v671
          %v678 = vpop.permute.xlu0 %677
          %681 = vset.pattern.permute.xlu0 0
          %682 = vperm.xlu0 %681, %v672
          %v683 = vpop.permute.xlu0 %682
          %686 = vset.pattern.permute.xlu0 0
          %687 = vperm.xlu0 %686, %v673
          %v688 = vpop.permute.xlu0 %687
          %691 = vset.pattern.permute.xlu0 0
          %692 = vperm.xlu0 %691, %v674
          %v693 = vpop.permute.xlu0 %692
          %v695 = vmul.f32 %v667, %v678
          %v696 = vmul.f32 %v668, %v683
          %v697 = vmul.f32 %v669, %v688
          %v698 = vmul.f32 %v670, %v693
          %v699 = vld [vmem:[%s418] sm:$0xf]
          %v700 = vld [vmem:[%s418 + $0x4] sm:$0xf]
          %v701 = vld [vmem:[%s418 + $0x8] sm:$0xf]
          %v702 = vld [vmem:[%s418 + $0xc] sm:$0xf]
          %v703 = vld [vmem:[%s5] sm:$0xf]
          %v704 = vld [vmem:[%s5 + $0x4] sm:$0xf]
          %v705 = vld [vmem:[%s5 + $0x8] sm:$0xf]
          %v706 = vld [vmem:[%s5 + $0xc] sm:$0xf]
          %v707 = vld [vmem:[%s5 + $0x10] sm:$0xf]
          %v708 = vld [vmem:[%s5 + $0x14] sm:$0xf]
          %v709 = vld [vmem:[%s5 + $0x18] sm:$0xf]
          %v710 = vld [vmem:[%s5 + $0x1c] sm:$0xf]
          %v711 = vld [vmem:[%s5 + $0x20] sm:$0xf]
          %v712 = vld [vmem:[%s5 + $0x24] sm:$0xf]
          %v713 = vld [vmem:[%s5 + $0x28] sm:$0xf]
          %v714 = vld [vmem:[%s5 + $0x2c] sm:$0xf]
          %v715 = vld [vmem:[%s5 + $0x30] sm:$0xf]
          %v716 = vld [vmem:[%s5 + $0x34] sm:$0xf]
          %v717 = vld [vmem:[%s5 + $0x38] sm:$0xf]
          %v718 = vld [vmem:[%s5 + $0x3c] sm:$0xf]
          %v723 = vunpack.c.l.b16 %v699
          %v724 = vunpack.c.l.b16 %v700
          %v725 = vunpack.c.l.b16 %v701
          %v726 = vunpack.c.l.b16 %v702
          %v727 = vpack.c.b16 %v724, %v723
          %v728 = vpack.c.b16 %v726, %v725
          %v747 = vunpack.c.l.b16 %v703
          %v748 = vunpack.c.l.b16 %v704
          %v749 = vunpack.c.l.b16 %v705
          %v750 = vunpack.c.l.b16 %v706
          %v751 = vunpack.c.l.b16 %v707
          %v752 = vunpack.c.l.b16 %v708
          %v753 = vunpack.c.l.b16 %v709
          %v754 = vunpack.c.l.b16 %v710
          %v755 = vunpack.c.l.b16 %v711
          %v756 = vunpack.c.l.b16 %v712
          %v757 = vunpack.c.l.b16 %v713
          %v758 = vunpack.c.l.b16 %v714
          %v759 = vunpack.c.l.b16 %v715
          %v760 = vunpack.c.l.b16 %v716
          %v761 = vunpack.c.l.b16 %v717
          %v762 = vunpack.c.l.b16 %v718
          %v763 = vpack.c.b16 %v748, %v747
          %v764 = vpack.c.b16 %v750, %v749
          %v765 = vpack.c.b16 %v752, %v751
          %v766 = vpack.c.b16 %v754, %v753
          %v767 = vpack.c.b16 %v756, %v755
          %v768 = vpack.c.b16 %v758, %v757
          %v769 = vpack.c.b16 %v760, %v759
          %v770 = vpack.c.b16 %v762, %v761
          %779 = vmatpush.bf16.msra.mxu0 %v770
          %780 = vmatpush.bf16.msra.mxu0 %v769
          %781 = vmatpush.bf16.msra.mxu0 %v768
          %782 = vmatpush.bf16.msra.mxu0 %v767
          %783 = vmatpush.bf16.msra.mxu0 %v766
          %784 = vmatpush.bf16.msra.mxu0 %v765
          %785 = vmatpush.bf16.msra.mxu0 %v764
          %786 = vmatpush.bf16.msra.mxu0 %v763
          %787 = vmatmul.bf16.gmra.mxu0 %v727
          %v788 = vpop.f32.mrf.mxu0
          %v789 = vadd.f32 0.0, %v788
          %v790 = vpop.f32.mrf.mxu0
          %v791 = vadd.f32 0.0, %v790
          %792 = vmatmul.bf16.gmra.mxu0 %v728
          %v793 = vpop.f32.mrf.mxu0
          %v794 = vadd.f32 0.0, %v793
          %v795 = vpop.f32.mrf.mxu0
          %v796 = vadd.f32 0.0, %v795
          %797 = vdwg.mxu0
          %v798 = vadd.f32 %v695, %v789
          %v799 = vadd.f32 %v696, %v791
          %v800 = vadd.f32 %v697, %v794
          %v801 = vadd.f32 %v698, %v796
          %v802 = vld [vmem:[%s6] sm:$0x1]
          %v804 = vperm.slane %v802, 0
          %v806 = vadd.f32 %v798, %v804
          %v807 = vadd.f32 %v799, %v804
          %v808 = vadd.f32 %v800, %v804
          %v809 = vadd.f32 %v801, %v804
          %v810 = vmax.f32 %v806, 0.0
          %v811 = vmax.f32 %v807, 0.0
          %v812 = vmax.f32 %v808, 0.0
          %v813 = vmax.f32 %v809, 0.0
          %v814 = vpack.c.bf16 %v810, %v810
          %v815 = vpack.c.bf16 %v811, %v811
          %v816 = vpack.c.bf16 %v812, %v812
          %v817 = vpack.c.bf16 %v813, %v813
          %818 = vst [vmem:[%s446] sm:$0xf] %v814
          %819 = vst [vmem:[%s446 + $0x4] sm:$0xf] %v815
          %820 = vst [vmem:[%s446 + $0x8] sm:$0xf] %v816
          %821 = vst [vmem:[%s446 + $0xc] sm:$0xf] %v817
        $region97: #{complex_forward.5} parent=80 // pred_fallthru
          _
        %s822 = smul.u32 4, %s32
        %p823 = scmp.lt.s32.totalorder %s31, 1
        %s824 = scalar_select %p823, %s31, 1
        %p825 = scmp.lt.s32.totalorder %s822, 3
        %s826 = scalar_select %p825, %s822, 3
        %s827 = smul.addr %s824, 4
        %s828 = sadd.s32 %s826, %s827
        %s829 = smul.addr %s828, 4
        %s830 = scalar_lea.vmem %s7, %s829
        // Predicated region
        $region98: #{complex_forward.5} parent=80 // pred_check
          %p831 = pneg %p217
        $region99: #{complex_forward.5} parent=80 // pred_check_branch
          %833 = sbr.rel (%p831) target = $region101
        $region100: #{complex_forward.5} parent=80 // pred_region
          %s834 = smul.u32 4, %s32
        $region101: #{complex_forward.5} parent=80 // pred_fallthru
          _
      $region81: #{complex_forward.5} parent=5 // pred_fallthru
        _
      %p835 = scmp.le.s32.totalorder 2, %s21
      // Predicated region
      $region102: #{complex_forward.5} parent=5 // pred_check
        %p836 = pneg %p835
      $region103: #{complex_forward.5} parent=5 // pred_check_branch
        %838 = sbr.rel (%p836) target = $region105
      $region104: #{complex_forward.5} parent=5 // pred_region
        %s839 = ssub.s32 %s21, 2
        // Predicated region
        $region106: #{complex_forward.5} parent=104 // pred_check
          %p840 = pneg %p223
        $region107: #{complex_forward.5} parent=104 // pred_check_branch
          %842 = sbr.rel (%p840) target = $region109
        $region108: #{complex_forward.5} parent=104 // pred_region
          %s843 = smul.u32 4, %s35
          %p844 = scmp.lt.s32.totalorder %s34, 1
          %s845 = scalar_select %p844, %s34, 1
          %p846 = scmp.lt.s32.totalorder %s843, 3
          %s847 = scalar_select %p846, %s843, 3
          %s848 = smul.addr %s845, 4
          %s849 = sadd.s32 %s847, %s848
          %s850 = smul.addr %s849, 4
          %s851 = scalar_lea.vmem %s7, %s850
        $region109: #{complex_forward.5} parent=104 // pred_fallthru
          _
      $region105: #{complex_forward.5} parent=5 // pred_fallthru
        _
    $region6: #{complex_forward.5} parent=1 // loop_footer
      %s25 = sadd.s32 1, %s21
    $region7: #{complex_forward.5} parent=1 // loop_footer_branch
      %20 = sbr.rel target = $region3
    $region8: #{complex_forward.5} parent=1 // loop_exit
      _

// kernel: complex_forward.7
$region0: #{complex_forward.7}
  #allocation0 [shape = 'u32[]', space=smem, size = 0x4, offset = 0x4, fixed_abs, tag = 'smem constant byte address 0x4 - core index']
  #allocation1 [shape = 'u32[72,128]{1,0:T(1,128)}', space=vmem, size = 0x9000, scoped, tag = 'internal scratch']
  #allocation2 [shape = 'f32[32,128]{1,0:T(8,128)}', space=vmem, size = 0x4000, scoped, tag = 'scratch operand']
  #allocation3 [shape = 's32[1]{0}', space=sflag, size = 0x4, scoped, tag = 'scoped memory for complex_forward.7']
  #allocation4 [shape = 'u8[512]{0}', space=smem, size = 0x200, scoped, tag = 'prefetched SMEM operand 0']
  %s0 = inlined_call_operand.vmem [shape: s32[9], index: 0, kind: input, shape index: {}]
  %s1 = inlined_call_operand.vmem [shape: bf16[2,32,128], index: 1, kind: input, shape index: {}]
  %s2 = inlined_call_operand.vmem [shape: bf16[2,2304,128], index: 2, kind: input, shape index: {}]
  %s3 = inlined_call_operand.vmem [shape: s8[32,2304], index: 3, kind: input, shape index: {}]
  %s4 = inlined_call_operand.vmem [shape: f32[32,1], index: 4, kind: input, shape index: {}]
  %s5 = inlined_call_operand.vmem [shape: bf16[128,128], index: 5, kind: input, shape index: {}]
  %s6 = inlined_call_operand.vmem [shape: f32[1,128], index: 6, kind: input, shape index: {}]
  %s7 = inlined_call_operand.vmem [shape: f32[2,32,128], index: 7, kind: output, shape index: {}]
  %s8 = sld [smem:[#allocation0]]
  $region110: #{complex_forward.7} parent=0
    _
  %s10 = ssub.s32 1, %s8
  %s11 = scalar_select 0, %s10, %s8
  %s13 = sshll.u32 %s0, 4
  %s14 = int_to_ptr.vmem [resolvable:$true] %s13
  %16 = dma.vmem_to_smem %s14, 16, [#allocation4], [#allocation3]
  %18 = dma.done [#allocation3], 16
  %19 = sfence
  $region1: #{complex_forward.7} parent=0
    #allocation5 [shape = 'u8[16384]{0}', space=vmem, size = 0x4000, scoped, tag = 'input window, operand 3']
    loop: start=0, step=1, limit=20
    $region2: #{complex_forward.7} parent=1 // loop_pre_header
      _
    $region3: #{complex_forward.7} parent=1 // loop_header
      %s21 = sphi 0, %s25
      %p22 = scmp.ge.s32.totalorder %s21, 20
      %s28 = sphi 0, %s47
      %s29 = sphi 0, %s43
      %s30 = sphi 0, %s39
      %s31 = sphi 0, %s28
      %s32 = sphi 0, %s29
      %s33 = sphi 0, %s30
      %s34 = sphi 0, %s31
      %s35 = sphi 0, %s32
      %s36 = sphi 0, %s33
      %s52 = sphi 0, %s54
      %s55 = sphi 0, %s52
      %s56 = sphi 0, %s55
      %s72 = sphi 0, %s56
      %s80 = sphi 0, %s82
      %s83 = sphi 0, %s80
      %s84 = sphi 0, %s83
      %s100 = sphi 0, %s84
      %s108 = sphi 0, %s110
      %s111 = sphi 0, %s108
      %s112 = sphi 0, %s111
      %s128 = sphi 0, %s112
      %s134 = sphi 0, %s136
      %s137 = sphi 0, %s134
      %s138 = sphi 0, %s137
      %s154 = sphi 0, %s138
      %s158 = sphi 0, %s158
      %s160 = sphi 0, %s158
      %s161 = sphi 0, %s160
      %s175 = sphi 0, %s161
      %s179 = sphi 0, %s179
      %s181 = sphi 0, %s179
      %s182 = sphi 0, %s181
      %s196 = sphi 0, %s182
      %s204 = sphi 0, %s206
      %s207 = sphi 0, %s204
      %s208 = sphi 0, %s207
      %s224 = sphi 0, %s208
    $region4: #{complex_forward.7} parent=1 // loop_header_branch
      %24 = sbr.rel (%p22) target = $region8
    $region5: #{complex_forward.7} parent=1 // loop_body
      %s26 = ssub.s32 %s21, 1
      %s27 = ssub.s32 %s21, 2
      %s37 = sadd.s32 1, %s30
      %p38 = scmp.ge.s32.totalorder %s37, 9
      %s39 = scalar_select %p38, 0, %s37
      %s40 = sadd.s32 1, %s29
      %s41 = scalar_select %p38, %s40, %s29
      %p42 = scmp.ge.s32.totalorder %s41, 1
      %s43 = scalar_select %p42, 0, %s41
      %s44 = sadd.s32 1, %s28
      %s45 = scalar_select %p42, %s44, %s28
      %p46 = scmp.ge.s32.totalorder %s45, 2
      %s47 = scalar_select %p46, 0, %s45
      %s48 = ssub.s32 %s28, %s47
      %s49 = ssub.s32 %s29, %s43
      %s50 = sor.u32 %s48, %s49
      %p51 = scmp.eq.s32.totalorder %s50, 0
      %s53 = sadd.s32 %s52, 1
      %s54 = scalar_select %p51, %s52, %s53
      %p57 = pneg %p51
      %p58 = scmp.eq.s32.totalorder %s21, 17
      %p59 = por %p57, %p58
      %p60 = scmp.ne.s32.totalorder %s52, %s55
      %p61 = scmp.eq.s32.totalorder %s21, 0
      %p62 = por %p60, %p61
      %p63 = scmp.ne.s32.totalorder %s52, %s55
      %p64 = scmp.eq.s32.totalorder %s26, 17
      %p65 = por %p63, %p64
      %p66 = scmp.ne.s32.totalorder %s55, %s56
      %p67 = scmp.eq.s32.totalorder %s26, 0
      %p68 = por %p66, %p67
      %p69 = scmp.ne.s32.totalorder %s55, %s56
      %p70 = scmp.eq.s32.totalorder %s27, 17
      %p71 = por %p69, %p70
      %p73 = scmp.ne.s32.totalorder %s56, %s72
      %p74 = scmp.eq.s32.totalorder %s27, 0
      %p75 = por %p73, %p74
      %s76 = ssub.s32 %s28, %s47
      %s77 = ssub.s32 %s30, %s39
      %s78 = sor.u32 %s76, %s77
      %p79 = scmp.eq.s32.totalorder %s78, 0
      %s81 = sadd.s32 %s80, 1
      %s82 = scalar_select %p79, %s80, %s81
      %p85 = pneg %p79
      %p86 = scmp.eq.s32.totalorder %s21, 17
      %p87 = por %p85, %p86
      %p88 = scmp.ne.s32.totalorder %s80, %s83
      %p89 = scmp.eq.s32.totalorder %s21, 0
      %p90 = por %p88, %p89
      %p91 = scmp.ne.s32.totalorder %s80, %s83
      %p92 = scmp.eq.s32.totalorder %s26, 17
      %p93 = por %p91, %p92
      %p94 = scmp.ne.s32.totalorder %s83, %s84
      %p95 = scmp.eq.s32.totalorder %s26, 0
      %p96 = por %p94, %p95
      %p97 = scmp.ne.s32.totalorder %s83, %s84
      %p98 = scmp.eq.s32.totalorder %s27, 17
      %p99 = por %p97, %p98
      %p101 = scmp.ne.s32.totalorder %s84, %s100
      %p102 = scmp.eq.s32.totalorder %s27, 0
      %p103 = por %p101, %p102
      %s104 = ssub.s32 %s29, %s43
      %s105 = ssub.s32 %s30, %s39
      %s106 = sor.u32 %s104, %s105
      %p107 = scmp.eq.s32.totalorder %s106, 0
      %s109 = sadd.s32 %s108, 1
      %s110 = scalar_select %p107, %s108, %s109
      %p113 = pneg %p107
      %p114 = scmp.eq.s32.totalorder %s21, 17
      %p115 = por %p113, %p114
      %p116 = scmp.ne.s32.totalorder %s108, %s111
      %p117 = scmp.eq.s32.totalorder %s21, 0
      %p118 = por %p116, %p117
      %p119 = scmp.ne.s32.totalorder %s108, %s111
      %p120 = scmp.eq.s32.totalorder %s26, 17
      %p121 = por %p119, %p120
      %p122 = scmp.ne.s32.totalorder %s111, %s112
      %p123 = scmp.eq.s32.totalorder %s26, 0
      %p124 = por %p122, %p123
      %p125 = scmp.ne.s32.totalorder %s111, %s112
      %p126 = scmp.eq.s32.totalorder %s27, 17
      %p127 = por %p125, %p126
      %p129 = scmp.ne.s32.totalorder %s112, %s128
      %p130 = scmp.eq.s32.totalorder %s27, 0
      %p131 = por %p129, %p130
      %s132 = ssub.s32 %s29, %s43
      %p133 = scmp.eq.s32.totalorder %s132, 0
      %s135 = sadd.s32 %s134, 1
      %s136 = scalar_select %p133, %s134, %s135
      %p139 = pneg %p133
      %p140 = scmp.eq.s32.totalorder %s21, 17
      %p141 = por %p139, %p140
      %p142 = scmp.ne.s32.totalorder %s134, %s137
      %p143 = scmp.eq.s32.totalorder %s21, 0
      %p144 = por %p142, %p143
      %p145 = scmp.ne.s32.totalorder %s134, %s137
      %p146 = scmp.eq.s32.totalorder %s26, 17
      %p147 = por %p145, %p146
      %p148 = scmp.ne.s32.totalorder %s137, %s138
      %p149 = scmp.eq.s32.totalorder %s26, 0
      %p150 = por %p148, %p149
      %p151 = scmp.ne.s32.totalorder %s137, %s138
      %p152 = scmp.eq.s32.totalorder %s27, 17
      %p153 = por %p151, %p152
      %p155 = scmp.ne.s32.totalorder %s138, %s154
      %p156 = scmp.eq.s32.totalorder %s27, 0
      %p157 = por %p155, %p156
      %s159 = sadd.s32 %s158, 1
      %p162 = scmp.eq.s32.totalorder %s21, 17
      %p163 = scmp.ne.s32.totalorder %s158, %s160
      %p164 = scmp.eq.s32.totalorder %s21, 0
      %p165 = por %p163, %p164
      %p166 = scmp.ne.s32.totalorder %s158, %s160
      %p167 = scmp.eq.s32.totalorder %s26, 17
      %p168 = por %p166, %p167
      %p169 = scmp.ne.s32.totalorder %s160, %s161
      %p170 = scmp.eq.s32.totalorder %s26, 0
      %p171 = por %p169, %p170
      %p172 = scmp.ne.s32.totalorder %s160, %s161
      %p173 = scmp.eq.s32.totalorder %s27, 17
      %p174 = por %p172, %p173
      %p176 = scmp.ne.s32.totalorder %s161, %s175
      %p177 = scmp.eq.s32.totalorder %s27, 0
      %p178 = por %p176, %p177
      %s180 = sadd.s32 %s179, 1
      %p183 = scmp.eq.s32.totalorder %s21, 17
      %p184 = scmp.ne.s32.totalorder %s179, %s181
      %p185 = scmp.eq.s32.totalorder %s21, 0
      %p186 = por %p184, %p185
      %p187 = scmp.ne.s32.totalorder %s179, %s181
      %p188 = scmp.eq.s32.totalorder %s26, 17
      %p189 = por %p187, %p188
      %p190 = scmp.ne.s32.totalorder %s181, %s182
      %p191 = scmp.eq.s32.totalorder %s26, 0
      %p192 = por %p190, %p191
      %p193 = scmp.ne.s32.totalorder %s181, %s182
      %p194 = scmp.eq.s32.totalorder %s27, 17
      %p195 = por %p193, %p194
      %p197 = scmp.ne.s32.totalorder %s182, %s196
      %p198 = scmp.eq.s32.totalorder %s27, 0
      %p199 = por %p197, %p198
      %s200 = ssub.s32 %s28, %s47
      %s201 = ssub.s32 %s29, %s43
      %s202 = sor.u32 %s200, %s201
      %p203 = scmp.eq.s32.totalorder %s202, 0
      %s205 = sadd.s32 %s204, 1
      %s206 = scalar_select %p203, %s204, %s205
      %p209 = pneg %p203
      %p210 = scmp.eq.s32.totalorder %s21, 17
      %p211 = por %p209, %p210
      %p212 = scmp.ne.s32.totalorder %s204, %s207
      %p213 = scmp.eq.s32.totalorder %s21, 0
      %p214 = por %p212, %p213
      %p215 = scmp.ne.s32.totalorder %s204, %s207
      %p216 = scmp.eq.s32.totalorder %s26, 17
      %p217 = por %p215, %p216
      %p218 = scmp.ne.s32.totalorder %s207, %s208
      %p219 = scmp.eq.s32.totalorder %s26, 0
      %p220 = por %p218, %p219
      %p221 = scmp.ne.s32.totalorder %s207, %s208
      %p222 = scmp.eq.s32.totalorder %s27, 17
      %p223 = por %p221, %p222
      %p225 = scmp.ne.s32.totalorder %s208, %s224
      %p226 = scmp.eq.s32.totalorder %s27, 0
      %p227 = por %p225, %p226
      %p228 = scmp.le.s32.totalorder 1, %s21
      %p229 = scmp.lt.s32.totalorder %s21, 19
      %p230 = pnand %p228, %p229
      %p231 = pneg %p230
      // Predicated region
      $region9: #{complex_forward.7} parent=5 // pred_check
        _
      $region10: #{complex_forward.7} parent=5 // pred_check_branch
        %233 = sbr.rel (%p230) target = $region12
      $region11: #{complex_forward.7} parent=5 // pred_region
        %s234 = ssub.s32 %s21, 1
        // Predicated region
        $region13: #{complex_forward.7} parent=11 // pred_check
          %p235 = pneg %p150
        $region14: #{complex_forward.7} parent=11 // pred_check_branch
          %237 = sbr.rel (%p235) target = $region16
        $region15: #{complex_forward.7} parent=11 // pred_region
          %s238 = smul.u32 4, %s32
          %p239 = scmp.lt.s32.totalorder %s238, 3
          %s240 = scalar_select %p239, %s238, 3
          %s241 = smul.addr %s240, 8
          %s242 = scalar_lea.vmem %s4, %s241
          %s243 = smul.u32 4, %s32
        $region16: #{complex_forward.7} parent=11 // pred_fallthru
          _
        // Predicated region
        $region17: #{complex_forward.7} parent=11 // pred_check
          %p244 = pneg %p171
        $region18: #{complex_forward.7} parent=11 // pred_check_branch
          %246 = sbr.rel (%p244) target = $region20
        $region19: #{complex_forward.7} parent=11 // pred_region
          _
        $region20: #{complex_forward.7} parent=11 // pred_fallthru
          _
        // Predicated region
        $region21: #{complex_forward.7} parent=11 // pred_check
          %p247 = pneg %p192
        $region22: #{complex_forward.7} parent=11 // pred_check_branch
          %249 = sbr.rel (%p247) target = $region24
        $region23: #{complex_forward.7} parent=11 // pred_region
          _
        $region24: #{complex_forward.7} parent=11 // pred_fallthru
          _
      $region12: #{complex_forward.7} parent=5 // pred_fallthru
        _
      %p250 = scmp.lt.s32.totalorder %s21, 18
      // Predicated region
      $region25: #{complex_forward.7} parent=5 // pred_check
        %p251 = pneg %p250
      $region26: #{complex_forward.7} parent=5 // pred_check_branch
        %253 = sbr.rel (%p251) target = $region28
      $region27: #{complex_forward.7} parent=5 // pred_region
        // Predicated region
        $region29: #{complex_forward.7} parent=27 // pred_check
          %p254 = pneg %p62
        $region30: #{complex_forward.7} parent=27 // pred_check_branch
          %256 = sbr.rel (%p254) target = $region32
        $region31: #{complex_forward.7} parent=27 // pred_region
          %s257 = smul.u32 4, %s29
          %p258 = scmp.lt.s32.totalorder %s28, 1
          %s259 = scalar_select %p258, %s28, 1
          %p260 = scmp.lt.s32.totalorder %s257, 3
          %s261 = scalar_select %p260, %s257, 3
          %s262 = smul.addr %s259, 4
          %s263 = sadd.s32 %s261, %s262
          %s264 = smul.addr %s263, 4
          %s265 = scalar_lea.vmem %s1, %s264
          %s266 = smul.u32 4, %s29
        $region32: #{complex_forward.7} parent=27 // pred_fallthru
          _
        // Predicated region
        $region33: #{complex_forward.7} parent=27 // pred_check
          %p267 = pneg %p90
        $region34: #{complex_forward.7} parent=27 // pred_check_branch
          %269 = sbr.rel (%p267) target = $region36
        $region35: #{complex_forward.7} parent=27 // pred_region
          %s270 = smul.u32 32, %s30
          %p271 = scmp.lt.s32.totalorder %s28, 1
          %s272 = scalar_select %p271, %s28, 1
          %p273 = scmp.lt.s32.totalorder %s270, 287
          %s274 = scalar_select %p273, %s270, 287
          %s275 = smul.addr %s272, 288
          %s276 = sadd.s32 %s274, %s275
          %s277 = smul.addr %s276, 4
          %s278 = scalar_lea.vmem %s2, %s277
          %s279 = smul.u32 32, %s30
        $region36: #{complex_forward.7} parent=27 // pred_fallthru
          _
        // Predicated region
        $region37: #{complex_forward.7} parent=27 // pred_check
          %p280 = pneg %p118
        $region38: #{complex_forward.7} parent=27 // pred_check_branch
          %282 = sbr.rel (%p280) target = $region40
        $region39: #{complex_forward.7} parent=27 // pred_region
          %s283 = sand.u32 %s108, 1
          %s284 = sand.u32 %s108, 1
          %s285 = smul.addr %s284, 16
          %s286 = scalar_lea.vmem [#allocation5], %s285
          %s287 = smul.u32 4, %s29
          %s288 = smul.u32 2, %s30
          %s289 = smul.addr %s287, 18
          %s290 = sadd.s32 %s288, %s289
          %s291 = smul.addr %s290, 2
          %s292 = scalar_lea.vmem %s3, %s291
          // Predicated region
          $region41: #{complex_forward.7} parent=39 // pred_check
            _
          $region42: #{complex_forward.7} parent=39 // pred_check_branch
            %294 = sbr.rel (0) target = $region44
          $region43: #{complex_forward.7} parent=39 // pred_region
            // Predicated region
            $region45: #{complex_forward.7} parent=43 // pred_check
              _
            $region46: #{complex_forward.7} parent=43 // pred_check_branch
              %296 = sbr.rel target = $region48
            $region47: #{complex_forward.7} parent=43 // pred_region
              // Predicated region
              $region60: #{complex_forward.7} parent=47 // pred_check
                _
              $region61: #{complex_forward.7} parent=47 // pred_check_branch
                %318 = sbr.rel (0) target = $region63
              $region62: #{complex_forward.7} parent=47 // pred_region
                loop: start=0, step=1, limit=1
                $region64: #{complex_forward.7} parent=62 // loop_pre_header
                  _
                $region65: #{complex_forward.7} parent=62 // loop_header
                  %s320 = sphi 0, %s324
                  %p321 = scmp.ge.s32.totalorder %s320, 1
                  %s325 = sphi %s292, %s292
                  %s326 = sphi %s286, %s286
                $region66: #{complex_forward.7} parent=62 // loop_header_branch
                  %323 = sbr.rel (%p321) target = $region70
                $region67: #{complex_forward.7} parent=62 // loop_body
                  _
                $region68: #{complex_forward.7} parent=62 // loop_footer
                  %s324 = sadd.s32 1, %s320
                $region69: #{complex_forward.7} parent=62 // loop_footer_branch
                  %319 = sbr.rel target = $region65
                $region70: #{complex_forward.7} parent=62 // loop_exit
                  _
                %s328 = ssub.s32 16, 1
                loop: start=0, step=1, limit=1
                $region71: #{complex_forward.7} parent=62 // loop_pre_header
                  _
                $region72: #{complex_forward.7} parent=62 // loop_header
                  %s330 = sphi 0, %s334
                  %p331 = scmp.ge.s32.totalorder %s330, 1
                  %s335 = sphi %s292, %s292
                  %s336 = sphi %s286, %s286
                $region73: #{complex_forward.7} parent=62 // loop_header_branch
                  %333 = sbr.rel (%p331) target = $region77
                $region74: #{complex_forward.7} parent=62 // loop_body
                  %v337 = vld [vmem:[%s335] sm:%s328]
                  %338 = vst [vmem:[%s336] sm:%s328] %v337
                  %v339 = vld [vmem:[%s335 + $0x24] sm:%s328]
                  %340 = vst [vmem:[%s336 + $0x4] sm:%s328] %v339
                  %v341 = vld [vmem:[%s335 + $0x48] sm:%s328]
                  %342 = vst [vmem:[%s336 + $0x8] sm:%s328] %v341
                  %v343 = vld [vmem:[%s335 + $0x6c] sm:%s328]
                  %344 = vst [vmem:[%s336 + $0xc] sm:%s328] %v343
                $region75: #{complex_forward.7} parent=62 // loop_footer
                  %s334 = sadd.s32 1, %s330
                $region76: #{complex_forward.7} parent=62 // loop_footer_branch
                  %329 = sbr.rel target = $region72
                $region77: #{complex_forward.7} parent=62 // loop_exit
                  _
              $region63: #{complex_forward.7} parent=47 // pred_fallthru
                _
            $region48: #{complex_forward.7} parent=43 // pred_fallthru
              _
            // Predicated region
            $region49: #{complex_forward.7} parent=43 // pred_check
              _
            $region50: #{complex_forward.7} parent=43 // pred_check_branch
              %298 = sbr.rel (0) target = $region52
            $region51: #{complex_forward.7} parent=43 // pred_region
              %s300 = ssub.s32 16, 1
              loop: start=0, step=1, limit=1
              $region53: #{complex_forward.7} parent=51 // loop_pre_header
                _
              $region54: #{complex_forward.7} parent=51 // loop_header
                %s302 = sphi 0, %s306
                %p303 = scmp.ge.s32.totalorder %s302, 1
                %s307 = sphi %s292, %s292
                %s308 = sphi %s286, %s286
              $region55: #{complex_forward.7} parent=51 // loop_header_branch
                %305 = sbr.rel (%p303) target = $region59
              $region56: #{complex_forward.7} parent=51 // loop_body
                %v309 = vld [vmem:[%s307] sm:%s300]
                %310 = vst [vmem:[%s308] sm:%s300] %v309
                %v311 = vld [vmem:[%s307 + $0x24] sm:%s300]
                %312 = vst [vmem:[%s308 + $0x4] sm:%s300] %v311
                %v313 = vld [vmem:[%s307 + $0x48] sm:%s300]
                %314 = vst [vmem:[%s308 + $0x8] sm:%s300] %v313
                %v315 = vld [vmem:[%s307 + $0x6c] sm:%s300]
                %316 = vst [vmem:[%s308 + $0xc] sm:%s300] %v315
              $region57: #{complex_forward.7} parent=51 // loop_footer
                %s306 = sadd.s32 1, %s302
              $region58: #{complex_forward.7} parent=51 // loop_footer_branch
                %301 = sbr.rel target = $region54
              $region59: #{complex_forward.7} parent=51 // loop_exit
                _
            $region52: #{complex_forward.7} parent=43 // pred_fallthru
              _
          $region44: #{complex_forward.7} parent=39 // pred_fallthru
            _
          %345 = vnop
        $region40: #{complex_forward.7} parent=27 // pred_fallthru
          _
      $region28: #{complex_forward.7} parent=5 // pred_fallthru
        _
      %p346 = scmp.le.s32.totalorder 1, %s21
      %p347 = scmp.lt.s32.totalorder %s21, 19
      %p348 = pnand %p346, %p347
      %p349 = pneg %p348
      // Predicated region
      $region78: #{complex_forward.7} parent=5 // pred_check
        _
      $region79: #{complex_forward.7} parent=5 // pred_check_branch
        %351 = sbr.rel (%p348) target = $region81
      $region80: #{complex_forward.7} parent=5 // pred_region
        %s352 = ssub.s32 %s21, 1
        %s353 = sand.u32 %s111, 1
        %s354 = sand.u32 %s111, 1
        %s355 = smul.addr %s354, 16
        %s356 = scalar_lea.vmem [#allocation5], %s355
        // Predicated region
        $region82: #{complex_forward.7} parent=80 // pred_check
          %p357 = pneg %p124
        $region83: #{complex_forward.7} parent=80 // pred_check_branch
          %359 = sbr.rel (%p357) target = $region85
        $region84: #{complex_forward.7} parent=80 // pred_region
          _
        $region85: #{complex_forward.7} parent=80 // pred_fallthru
          _
        %s360 = smul.u32 4, %s32
        %p361 = scmp.lt.s32.totalorder %s31, 1
        %s362 = scalar_select %p361, %s31, 1
        %p363 = scmp.lt.s32.totalorder %s360, 3
        %s364 = scalar_select %p363, %s360, 3
        %s365 = smul.addr %s362, 4
        %s366 = sadd.s32 %s364, %s365
        %s367 = smul.addr %s366, 4
        %s368 = scalar_lea.vmem %s1, %s367
        %p369 = pneg %p68
        %p370 = pneg %p65
        %s371 = smul.u32 32, %s33
        %p372 = scmp.lt.s32.totalorder %s31, 1
        %s373 = scalar_select %p372, %s31, 1
        %p374 = scmp.lt.s32.totalorder %s371, 287
        %s375 = scalar_select %p374, %s371, 287
        %s376 = smul.addr %s373, 288
        %s377 = sadd.s32 %s375, %s376
        %s378 = smul.addr %s377, 4
        %s379 = scalar_lea.vmem %s2, %s378
        %p380 = pneg %p96
        %p381 = pneg %p93
        %s382 = sand.u32 %s111, 1
        %s383 = sand.u32 %s111, 1
        %s384 = smul.addr %s383, 16
        %s385 = scalar_lea.vmem [#allocation5], %s384
        %p386 = pneg %p124
        %p387 = pneg %p121
        %s388 = smul.u32 4, %s32
        %p389 = scmp.lt.s32.totalorder %s388, 3
        %s390 = scalar_select %p389, %s388, 3
        %s391 = smul.addr %s390, 8
        %s392 = scalar_lea.vmem %s4, %s391
        %p393 = pneg %p150
        %p394 = pneg %p147
        %p395 = pneg %p171
        %p396 = pneg %p168
        %p397 = pneg %p192
        %p398 = pneg %p189
        %p399 = pneg %p220
        %p400 = pneg %p217
        %s401 = smul.u32 4, %s32
        %p402 = scmp.lt.s32.totalorder %s31, 1
        %s403 = scalar_select %p402, %s31, 1
        %p404 = scmp.lt.s32.totalorder %s401, 3
        %s405 = scalar_select %p404, %s401, 3
        %s406 = smul.addr %s403, 4
        %s407 = sadd.s32 %s405, %s406
        %s408 = smul.addr %s407, 8
        %s409 = scalar_lea.vmem %s7, %s408
        %s410 = smul.u32 4, %s32
        %p411 = scmp.lt.s32.totalorder %s31, 1
        %s412 = scalar_select %p411, %s31, 1
        %p413 = scmp.lt.s32.totalorder %s410, 3
        %s414 = scalar_select %p413, %s410, 3
        %s415 = smul.addr %s412, 4
        %s416 = sadd.s32 %s414, %s415
        %s417 = smul.addr %s416, 4
        %s418 = scalar_lea.vmem %s1, %s417
        %s419 = smul.u32 4, %s32
        %s420 = smul.u32 32, %s33
        %p421 = scmp.lt.s32.totalorder %s31, 1
        %s422 = scalar_select %p421, %s31, 1
        %p423 = scmp.lt.s32.totalorder %s420, 287
        %s424 = scalar_select %p423, %s420, 287
        %s425 = smul.addr %s422, 288
        %s426 = sadd.s32 %s424, %s425
        %s427 = smul.addr %s426, 4
        %s428 = scalar_lea.vmem %s2, %s427
        %s429 = smul.u32 32, %s33
        %s430 = smul.u32 4, %s32
        %s431 = smul.u32 2, %s33
        %s432 = smul.u32 4, %s32
        %p433 = scmp.lt.s32.totalorder %s432, 3
        %s434 = scalar_select %p433, %s432, 3
        %s435 = smul.addr %s434, 8
        %s436 = scalar_lea.vmem %s4, %s435
        %s437 = smul.u32 4, %s32
        %s438 = smul.u32 4, %s32
        %p439 = scmp.lt.s32.totalorder %s31, 1
        %s440 = scalar_select %p439, %s31, 1
        %p441 = scmp.lt.s32.totalorder %s438, 3
        %s442 = scalar_select %p441, %s438, 3
        %s443 = smul.addr %s440, 4
        %s444 = sadd.s32 %s442, %s443
        %s445 = smul.addr %s444, 8
        %s446 = scalar_lea.vmem %s7, %s445
        %s447 = smul.u32 4, %s32
        %p448 = scmp.eq.s32.totalorder %s33, 0
        // Predicated region
        $region86: #{complex_forward.7} parent=80 // pred_check
          %p449 = pneg %p448
        $region87: #{complex_forward.7} parent=80 // pred_check_branch
          %451 = sbr.rel (%p449) target = $region89
        $region88: #{complex_forward.7} parent=80 // pred_region
          %452 = vst [vmem:[#allocation2] sm:$0xff] 0.0
          %453 = vst [vmem:[#allocation2 + $0x8] sm:$0xff] 0.0
          %454 = vst [vmem:[#allocation2 + $0x10] sm:$0xff] 0.0
          %455 = vst [vmem:[#allocation2 + $0x18] sm:$0xff] 0.0
        $region89: #{complex_forward.7} parent=80 // pred_fallthru
          _
        %s456 = sld [smem:[#allocation4 + %s33]]
        %p457 = scmp.ne.s32.totalorder %s456, 0
        // Predicated region
        $region90: #{complex_forward.7} parent=80 // pred_check
          %p458 = pneg %p457
        $region91: #{complex_forward.7} parent=80 // pred_check_branch
          %460 = sbr.rel (%p458) target = $region93
        $region92: #{complex_forward.7} parent=80 // pred_region
          %v461 = vld [vmem:[#allocation2] sm:$0xff]
          %v462 = vld [vmem:[#allocation2 + $0x8] sm:$0xff]
          %v463 = vld [vmem:[#allocation2 + $0x10] sm:$0xff]
          %v464 = vld [vmem:[#allocation2 + $0x18] sm:$0xff]
          %v465 = vld [vmem:[%s356] sm:$0xf]
          %v466 = vld [vmem:[%s356 + $0x4] sm:$0xf]
          %v467 = vld [vmem:[%s356 + $0x8] sm:$0xf]
          %v468 = vld [vmem:[%s356 + $0xc] sm:$0xf]
          %v469 = vunpack.c.0.s8 %v465
          %v470 = vunpack.c.1.s8 %v465
          %v471 = vunpack.c.0.s8 %v466
          %v472 = vunpack.c.1.s8 %v466
          %v473 = vunpack.c.0.s8 %v467
          %v474 = vunpack.c.1.s8 %v467
          %v475 = vunpack.c.0.s8 %v468
          %v476 = vunpack.c.1.s8 %v468
          %v477 = vcvt.s32.f32 %v469
          %v478 = vcvt.s32.f32 %v470
          %v479 = vcvt.s32.f32 %v471
          %v480 = vcvt.s32.f32 %v472
          %v481 = vcvt.s32.f32 %v473
          %v482 = vcvt.s32.f32 %v474
          %v483 = vcvt.s32.f32 %v475
          %v484 = vcvt.s32.f32 %v476
          %v485 = vpack.c.bf16 %v479, %v477
          %v486 = vpack.c.bf16 %v480, %v478
          %v487 = vpack.c.bf16 %v483, %v481
          %v488 = vpack.c.bf16 %v484, %v482
          %v489 = vld [vmem:[%s428] sm:$0xf]
          %v490 = vld [vmem:[%s428 + $0x4] sm:$0xf]
          %v491 = vld [vmem:[%s428 + $0x8] sm:$0xf]
          %v492 = vld [vmem:[%s428 + $0xc] sm:$0xf]
          %v493 = vld [vmem:[%s428 + $0x10] sm:$0xf]
          %v494 = vld [vmem:[%s428 + $0x14] sm:$0xf]
          %v495 = vld [vmem:[%s428 + $0x18] sm:$0xf]
          %v496 = vld [vmem:[%s428 + $0x1c] sm:$0xf]
          %v497 = vld [vmem:[%s428 + $0x20] sm:$0xf]
          %v498 = vld [vmem:[%s428 + $0x24] sm:$0xf]
          %v499 = vld [vmem:[%s428 + $0x28] sm:$0xf]
          %v500 = vld [vmem:[%s428 + $0x2c] sm:$0xf]
          %v501 = vld [vmem:[%s428 + $0x30] sm:$0xf]
          %v502 = vld [vmem:[%s428 + $0x34] sm:$0xf]
          %v503 = vld [vmem:[%s428 + $0x38] sm:$0xf]
          %v504 = vld [vmem:[%s428 + $0x3c] sm:$0xf]
          %v505 = vld [vmem:[%s428 + $0x40] sm:$0xf]
          %v506 = vld [vmem:[%s428 + $0x44] sm:$0xf]
          %v507 = vld [vmem:[%s428 + $0x48] sm:$0xf]
          %v508 = vld [vmem:[%s428 + $0x4c] sm:$0xf]
          %v509 = vld [vmem:[%s428 + $0x50] sm:$0xf]
          %v510 = vld [vmem:[%s428 + $0x54] sm:$0xf]
          %v511 = vld [vmem:[%s428 + $0x58] sm:$0xf]
          %v512 = vld [vmem:[%s428 + $0x5c] sm:$0xf]
          %v513 = vld [vmem:[%s428 + $0x60] sm:$0xf]
          %v514 = vld [vmem:[%s428 + $0x64] sm:$0xf]
          %v515 = vld [vmem:[%s428 + $0x68] sm:$0xf]
          %v516 = vld [vmem:[%s428 + $0x6c] sm:$0xf]
          %v517 = vld [vmem:[%s428 + $0x70] sm:$0xf]
          %v518 = vld [vmem:[%s428 + $0x74] sm:$0xf]
          %v519 = vld [vmem:[%s428 + $0x78] sm:$0xf]
          %v520 = vld [vmem:[%s428 + $0x7c] sm:$0xf]
          %v553 = vunpack.c.l.b16 %v489
          %v554 = vunpack.c.l.b16 %v490
          %v555 = vunpack.c.l.b16 %v491
          %v556 = vunpack.c.l.b16 %v492
          %v557 = vunpack.c.l.b16 %v493
          %v558 = vunpack.c.l.b16 %v494
          %v559 = vunpack.c.l.b16 %v495
          %v560 = vunpack.c.l.b16 %v496
          %v561 = vunpack.c.l.b16 %v497
          %v562 = vunpack.c.l.b16 %v498
          %v563 = vunpack.c.l.b16 %v499
          %v564 = vunpack.c.l.b16 %v500
          %v565 = vunpack.c.l.b16 %v501
          %v566 = vunpack.c.l.b16 %v502
          %v567 = vunpack.c.l.b16 %v503
          %v568 = vunpack.c.l.b16 %v504
          %v569 = vunpack.c.l.b16 %v505
          %v570 = vunpack.c.l.b16 %v506
          %v571 = vunpack.c.l.b16 %v507
          %v572 = vunpack.c.l.b16 %v508
          %v573 = vunpack.c.l.b16 %v509
          %v574 = vunpack.c.l.b16 %v510
          %v575 = vunpack.c.l.b16 %v511
          %v576 = vunpack.c.l.b16 %v512
          %v577 = vunpack.c.l.b16 %v513
          %v578 = vunpack.c.l.b16 %v514
          %v579 = vunpack.c.l.b16 %v515
          %v580 = vunpack.c.l.b16 %v516
          %v581 = vunpack.c.l.b16 %v517
          %v582 = vunpack.c.l.b16 %v518
          %v583 = vunpack.c.l.b16 %v519
          %v584 = vunpack.c.l.b16 %v520
          %v585 = vpack.c.b16 %v554, %v553
          %v586 = vpack.c.b16 %v556, %v555
          %v587 = vpack.c.b16 %v558, %v557
          %v588 = vpack.c.b16 %v560, %v559
          %v589 = vpack.c.b16 %v562, %v561
          %v590 = vpack.c.b16 %v564, %v563
          %v591 = vpack.c.b16 %v566, %v565
          %v592 = vpack.c.b16 %v568, %v567
          %v593 = vpack.c.b16 %v570, %v569
          %v594 = vpack.c.b16 %v572, %v571
          %v595 = vpack.c.b16 %v574, %v573
          %v596 = vpack.c.b16 %v576, %v575
          %v597 = vpack.c.b16 %v578, %v577
          %v598 = vpack.c.b16 %v580, %v579
          %v599 = vpack.c.b16 %v582, %v581
          %v600 = vpack.c.b16 %v584, %v583
          %617 = vmatpush.bf16.msra.mxu0 %v592
          %618 = vmatpush.bf16.msra.mxu0 %v591
          %619 = vmatpush.bf16.msra.mxu0 %v590
          %620 = vmatpush.bf16.msra.mxu0 %v589
          %621 = vmatpush.bf16.msra.mxu0 %v588
          %622 = vmatpush.bf16.msra.mxu0 %v587
          %623 = vmatpush.bf16.msra.mxu0 %v586
          %624 = vmatpush.bf16.msra.mxu0 %v585
          %625 = vmatmul.bf16.gmra.mxu0 %v485
          %v626 = vpop.f32.mrf.mxu0
          %v627 = vadd.f32 0.0, %v626
          %v628 = vpop.f32.mrf.mxu0
          %v629 = vadd.f32 0.0, %v628
          %630 = vmatmul.bf16.gmra.mxu0 %v487
          %v631 = vpop.f32.mrf.mxu0
          %v632 = vadd.f32 0.0, %v631
          %v633 = vpop.f32.mrf.mxu0
          %v634 = vadd.f32 0.0, %v633
          %635 = vdwg.mxu0
          %636 = vmatpush.bf16.msra.mxu0 %v600
          %637 = vmatpush.bf16.msra.mxu0 %v599
          %638 = vmatpush.bf16.msra.mxu0 %v598
          %639 = vmatpush.bf16.msra.mxu0 %v597
          %640 = vmatpush.bf16.msra.mxu0 %v596
          %641 = vmatpush.bf16.msra.mxu0 %v595
          %642 = vmatpush.bf16.msra.mxu0 %v594
          %643 = vmatpush.bf16.msra.mxu0 %v593
          %644 = vmatmul.bf16.gmra.mxu0 %v486
          %v645 = vpop.f32.mrf.mxu0
          %v646 = vadd.f32 %v627, %v645
          %v647 = vpop.f32.mrf.mxu0
          %v648 = vadd.f32 %v629, %v647
          %649 = vmatmul.bf16.gmra.mxu0 %v488
          %v650 = vpop.f32.mrf.mxu0
          %v651 = vadd.f32 %v632, %v650
          %v652 = vpop.f32.mrf.mxu0
          %v653 = vadd.f32 %v634, %v652
          %654 = vdwg.mxu0
          %v655 = vadd.f32 %v461, %v646
          %v656 = vadd.f32 %v462, %v648
          %v657 = vadd.f32 %v463, %v651
          %v658 = vadd.f32 %v464, %v653
          %659 = vst [vmem:[#allocation2] sm:$0xff] %v655
          %660 = vst [vmem:[#allocation2 + $0x8] sm:$0xff] %v656
          %661 = vst [vmem:[#allocation2 + $0x10] sm:$0xff] %v657
          %662 = vst [vmem:[#allocation2 + $0x18] sm:$0xff] %v658
        $region93: #{complex_forward.7} parent=80 // pred_fallthru
          _
        %p663 = scmp.eq.s32.totalorder %s33, 8
        // Predicated region
        $region94: #{complex_forward.7} parent=80 // pred_check
          %p664 = pneg %p663
        $region95: #{complex_forward.7} parent=80 // pred_check_branch
          %666 = sbr.rel (%p664) target = $region97
        $region96: #{complex_forward.7} parent=80 // pred_region
          %v667 = vld [vmem:[#allocation2] sm:$0xff]
          %v668 = vld [vmem:[#allocation2 + $0x8] sm:$0xff]
          %v669 = vld [vmem:[#allocation2 + $0x10] sm:$0xff]
          %v670 = vld [vmem:[#allocation2 + $0x18] sm:$0xff]
          %v671 = vld [vmem:[%s436] sm:$0xff]
          %v672 = vld [vmem:[%s436 + $0x8] sm:$0xff]
          %v673 = vld [vmem:[%s436 + $0x10] sm:$0xff]
          %v674 = vld [vmem:[%s436 + $0x18] sm:$0xff]
          %676 = vset.pattern.permute.xlu0 0
          %677 = vperm.xlu0 %676, %v671
          %v678 = vpop.permute.xlu0 %677
          %681 = vset.pattern.permute.xlu0 0
          %682 = vperm.xlu0 %681, %v672
          %v683 = vpop.permute.xlu0 %682
          %686 = vset.pattern.permute.xlu0 0
          %687 = vperm.xlu0 %686, %v673
          %v688 = vpop.permute.xlu0 %687
          %691 = vset.pattern.permute.xlu0 0
          %692 = vperm.xlu0 %691, %v674
          %v693 = vpop.permute.xlu0 %692
          %v695 = vmul.f32 %v667, %v678
          %v696 = vmul.f32 %v668, %v683
          %v697 = vmul.f32 %v669, %v688
          %v698 = vmul.f32 %v670, %v693
          %v699 = vld [vmem:[%s418] sm:$0xf]
          %v700 = vld [vmem:[%s418 + $0x4] sm:$0xf]
          %v701 = vld [vmem:[%s418 + $0x8] sm:$0xf]
          %v702 = vld [vmem:[%s418 + $0xc] sm:$0xf]
          %v703 = vld [vmem:[%s5] sm:$0xf]
          %v704 = vld [vmem:[%s5 + $0x4] sm:$0xf]
          %v705 = vld [vmem:[%s5 + $0x8] sm:$0xf]
          %v706 = vld [vmem:[%s5 + $0xc] sm:$0xf]
          %v707 = vld [vmem:[%s5 + $0x10] sm:$0xf]
          %v708 = vld [vmem:[%s5 + $0x14] sm:$0xf]
          %v709 = vld [vmem:[%s5 + $0x18] sm:$0xf]
          %v710 = vld [vmem:[%s5 + $0x1c] sm:$0xf]
          %v711 = vld [vmem:[%s5 + $0x20] sm:$0xf]
          %v712 = vld [vmem:[%s5 + $0x24] sm:$0xf]
          %v713 = vld [vmem:[%s5 + $0x28] sm:$0xf]
          %v714 = vld [vmem:[%s5 + $0x2c] sm:$0xf]
          %v715 = vld [vmem:[%s5 + $0x30] sm:$0xf]
          %v716 = vld [vmem:[%s5 + $0x34] sm:$0xf]
          %v717 = vld [vmem:[%s5 + $0x38] sm:$0xf]
          %v718 = vld [vmem:[%s5 + $0x3c] sm:$0xf]
          %v723 = vunpack.c.l.b16 %v699
          %v724 = vunpack.c.l.b16 %v700
          %v725 = vunpack.c.l.b16 %v701
          %v726 = vunpack.c.l.b16 %v702
          %v727 = vpack.c.b16 %v724, %v723
          %v728 = vpack.c.b16 %v726, %v725
          %v747 = vunpack.c.l.b16 %v703
          %v748 = vunpack.c.l.b16 %v704
          %v749 = vunpack.c.l.b16 %v705
          %v750 = vunpack.c.l.b16 %v706
          %v751 = vunpack.c.l.b16 %v707
          %v752 = vunpack.c.l.b16 %v708
          %v753 = vunpack.c.l.b16 %v709
          %v754 = vunpack.c.l.b16 %v710
          %v755 = vunpack.c.l.b16 %v711
          %v756 = vunpack.c.l.b16 %v712
          %v757 = vunpack.c.l.b16 %v713
          %v758 = vunpack.c.l.b16 %v714
          %v759 = vunpack.c.l.b16 %v715
          %v760 = vunpack.c.l.b16 %v716
          %v761 = vunpack.c.l.b16 %v717
          %v762 = vunpack.c.l.b16 %v718
          %v763 = vpack.c.b16 %v748, %v747
          %v764 = vpack.c.b16 %v750, %v749
          %v765 = vpack.c.b16 %v752, %v751
          %v766 = vpack.c.b16 %v754, %v753
          %v767 = vpack.c.b16 %v756, %v755
          %v768 = vpack.c.b16 %v758, %v757
          %v769 = vpack.c.b16 %v760, %v759
          %v770 = vpack.c.b16 %v762, %v761
          %779 = vmatpush.bf16.msra.mxu0 %v770
          %780 = vmatpush.bf16.msra.mxu0 %v769
          %781 = vmatpush.bf16.msra.mxu0 %v768
          %782 = vmatpush.bf16.msra.mxu0 %v767
          %783 = vmatpush.bf16.msra.mxu0 %v766
          %784 = vmatpush.bf16.msra.mxu0 %v765
          %785 = vmatpush.bf16.msra.mxu0 %v764
          %786 = vmatpush.bf16.msra.mxu0 %v763
          %787 = vmatmul.bf16.gmra.mxu0 %v727
          %v788 = vpop.f32.mrf.mxu0
          %v789 = vadd.f32 0.0, %v788
          %v790 = vpop.f32.mrf.mxu0
          %v791 = vadd.f32 0.0, %v790
          %792 = vmatmul.bf16.gmra.mxu0 %v728
          %v793 = vpop.f32.mrf.mxu0
          %v794 = vadd.f32 0.0, %v793
          %v795 = vpop.f32.mrf.mxu0
          %v796 = vadd.f32 0.0, %v795
          %797 = vdwg.mxu0
          %v798 = vadd.f32 %v695, %v789
          %v799 = vadd.f32 %v696, %v791
          %v800 = vadd.f32 %v697, %v794
          %v801 = vadd.f32 %v698, %v796
          %v802 = vld [vmem:[%s6] sm:$0x1]
          %v804 = vperm.slane %v802, 0
          %v806 = vadd.f32 %v798, %v804
          %v807 = vadd.f32 %v799, %v804
          %v808 = vadd.f32 %v800, %v804
          %v809 = vadd.f32 %v801, %v804
          %810 = vst [vmem:[%s446] sm:$0xff] %v806
          %811 = vst [vmem:[%s446 + $0x8] sm:$0xff] %v807
          %812 = vst [vmem:[%s446 + $0x10] sm:$0xff] %v808
          %813 = vst [vmem:[%s446 + $0x18] sm:$0xff] %v809
        $region97: #{complex_forward.7} parent=80 // pred_fallthru
          _
        %s814 = smul.u32 4, %s32
        %p815 = scmp.lt.s32.totalorder %s31, 1
        %s816 = scalar_select %p815, %s31, 1
        %p817 = scmp.lt.s32.totalorder %s814, 3
        %s818 = scalar_select %p817, %s814, 3
        %s819 = smul.addr %s816, 4
        %s820 = sadd.s32 %s818, %s819
        %s821 = smul.addr %s820, 8
        %s822 = scalar_lea.vmem %s7, %s821
        // Predicated region
        $region98: #{complex_forward.7} parent=80 // pred_check
          %p823 = pneg %p217
        $region99: #{complex_forward.7} parent=80 // pred_check_branch
          %825 = sbr.rel (%p823) target = $region101
        $region100: #{complex_forward.7} parent=80 // pred_region
          %s826 = smul.u32 4, %s32
        $region101: #{complex_forward.7} parent=80 // pred_fallthru
          _
      $region81: #{complex_forward.7} parent=5 // pred_fallthru
        _
      %p827 = scmp.le.s32.totalorder 2, %s21
      // Predicated region
      $region102: #{complex_forward.7} parent=5 // pred_check
        %p828 = pneg %p827
      $region103: #{complex_forward.7} parent=5 // pred_check_branch
        %830 = sbr.rel (%p828) target = $region105
      $region104: #{complex_forward.7} parent=5 // pred_region
        %s831 = ssub.s32 %s21, 2
        // Predicated region
        $region106: #{complex_forward.7} parent=104 // pred_check
          %p832 = pneg %p223
        $region107: #{complex_forward.7} parent=104 // pred_check_branch
          %834 = sbr.rel (%p832) target = $region109
        $region108: #{complex_forward.7} parent=104 // pred_region
          %s835 = smul.u32 4, %s35
          %p836 = scmp.lt.s32.totalorder %s34, 1
          %s837 = scalar_select %p836, %s34, 1
          %p838 = scmp.lt.s32.totalorder %s835, 3
          %s839 = scalar_select %p838, %s835, 3
          %s840 = smul.addr %s837, 4
          %s841 = sadd.s32 %s839, %s840
          %s842 = smul.addr %s841, 8
          %s843 = scalar_lea.vmem %s7, %s842
        $region109: #{complex_forward.7} parent=104 // pred_fallthru
          _
      $region105: #{complex_forward.7} parent=5 // pred_fallthru
        _
    $region6: #{complex_forward.7} parent=1 // loop_footer
      %s25 = sadd.s32 1, %s21
    $region7: #{complex_forward.7} parent=1 // loop_footer_branch
      %20 = sbr.rel target = $region3
    $region8: #{complex_forward.7} parent=1 // loop_exit
      _

</llo_original>
